<compile_context>
chip_gen: v5e
topology: v5e:2x2
jax: 0.10.0
libtpu: 0.0.40
codegen_flags: <defaults>
</compile_context>

<pallas_src>
import functools
import math

import jax
import jax.numpy as jnp
from jax import lax
from jax.experimental import pallas as pl
from jax.experimental.pallas import tpu as pltpu

KSIZE = 7
PAD = (KSIZE - 1) // 2  # 3


def _spatial_gate_kernel(x_ref, ids_ref, w_ref, b_ref, o_ref, *, H, W):
    # x_ref / o_ref : (C, H*W) VMEM blocks (one batch element, lane-dense)
    # ids_ref       : (2, H*W) int32 VMEM, row 0 = column index, row 1 = row index
    # w_ref         : (98,) SMEM flattened conv weight, layout [in_ch(max,mean), kh, kw]
    # b_ref         : (1,)  SMEM conv bias
    C, HW = x_ref.shape
    chunk = math.gcd(C, 8)                      # sublane-friendly channel chunk

    # ---- channel-wise max / mean, f32 accumulation, chunked reads ----------
    cmax = None
    csum = None
    for i in range(C // chunk):
        c0 = i * chunk
        blk = x_ref[c0:c0 + chunk, :].astype(jnp.float32)       # (chunk, HW)
        bmax = jnp.max(blk, axis=0, keepdims=True)
        bsum = jnp.sum(blk, axis=0, keepdims=True)
        cmax = bmax if cmax is None else jnp.maximum(cmax, bmax)
        csum = bsum if csum is None else csum + bsum
    cmean = csum * (1.0 / C)                                     # (1, HW) f32

    col = ids_ref[0:1, :]                                        # (1, HW) int32
    row = ids_ref[1:2, :]                                        # (1, HW) int32

    # ---- 7x7 "same" conv on the flattened maps ------------------------------
    # Tap (kh, kw) reads spatial offset (dh, dw) = (kh-3, kw-3).  In flat
    # (row-major) layout this is a lane roll by dh*W + dw; masks zero the
    # taps that would cross a row boundary (columns) or the image edge (rows).
    def conv_1ch(mflat, w_off):
        # 7 lane-shifted, column-masked copies (one per horizontal tap).
        shifted = []
        for kw in range(KSIZE):
            dw = kw - PAD
            if dw == 0:
                s = mflat
            else:
                s = pltpu.roll(mflat, (-dw) % HW, axis=1)
                ok = jnp.logical_and(col + dw >= 0, col + dw < W)
                s = jnp.where(ok, s, 0.0)
            shifted.append(s)
        # 7 independent per-dh partial sums -> one roll + row mask each.
        acc = None
        for kh in range(KSIZE):
            dh = kh - PAD
            t = shifted[0] * w_ref[w_off + kh * KSIZE]
            for kw in range(1, KSIZE):
                t = t + shifted[kw] * w_ref[w_off + kh * KSIZE + kw]
            if dh != 0:
                t = pltpu.roll(t, (-dh * W) % HW, axis=1)
                okr = jnp.logical_and(row + dh >= 0, row + dh < H)
                t = jnp.where(okr, t, 0.0)
            acc = t if acc is None else acc + t
        return acc

    conv = conv_1ch(cmax, 0) + conv_1ch(cmean, KSIZE * KSIZE) + b_ref[0]
    scale = jax.nn.sigmoid(conv)                                 # (1, HW) f32

    # ---- gating: re-read the resident VMEM block chunk-by-chunk -------------
    for i in range(C // chunk):
        c0 = i * chunk
        blk = x_ref[c0:c0 + chunk, :].astype(jnp.float32)
        o_ref[c0:c0 + chunk, :] = (blk * scale).astype(o_ref.dtype)


def spatial_gate(x, conv_w, conv_b):
    """x: (N, C, H, W) float; conv_w: (1, 2, 7, 7); conv_b: (1,)."""
    N, C, H, W = x.shape
    HW = H * W

    x_flat = x.reshape(N, C, HW)                       # lane-dense view (free)
    w_flat = conv_w.reshape(-1).astype(jnp.float32)    # (98,) -> SMEM
    b_flat = conv_b.reshape(-1).astype(jnp.float32)    # (1,)  -> SMEM

    pp = jnp.arange(HW, dtype=jnp.int32)
    ids = jnp.stack([pp % W, pp // W], axis=0)         # (2, HW): col idx, row idx

    # Scoped-VMEM budget: double-buffered in/out blocks + headroom.
    block_bytes = 2 * C * HW * x.dtype.itemsize
    vmem_limit = int(min(64 * 1024 * 1024,
                         max(16 * 1024 * 1024, 4 * block_bytes + (2 << 20))))

    kernel = functools.partial(_spatial_gate_kernel, H=H, W=W)
    out_flat = pl.pallas_call(
        kernel,
        out_shape=jax.ShapeDtypeStruct((N, C, HW), x.dtype),
        grid=(N,),
        in_specs=[
            pl.BlockSpec((None, C, HW), lambda n: (n, 0, 0)),
            pl.BlockSpec((2, HW), lambda n: (0, 0)),
            pl.BlockSpec(memory_space=pltpu.SMEM),
            pl.BlockSpec(memory_space=pltpu.SMEM),
        ],
        out_specs=pl.BlockSpec((None, C, HW), lambda n: (n, 0, 0)),
        compiler_params=pltpu.CompilerParams(
            dimension_semantics=("parallel",),
            vmem_limit_bytes=vmem_limit),
    )(x_flat, ids, w_flat, b_flat)
    return out_flat.reshape(N, C, H, W)


def spatial_gate_reference(x, conv_w, conv_b):
    """Pure-JAX reference mirroring the PyTorch module."""
    xmax = jnp.max(x, axis=1, keepdims=True)
    xmean = jnp.mean(x, axis=1, keepdims=True)
    xc = jnp.concatenate([xmax, xmean], axis=1)          # (N, 2, H, W)
    out = lax.conv_general_dilated(
        xc, conv_w, window_strides=(1, 1),
        padding=[(PAD, PAD), (PAD, PAD)],
        dimension_numbers=("NCHW", "OIHW", "NCHW"),
    ) + conv_b.reshape(1, 1, 1, 1)
    return x * jax.nn.sigmoid(out)


if __name__ == "__main__":
    key = jax.random.PRNGKey(0)
    k_x, k_w, k_b = jax.random.split(key, 3)

    N, C, H, W = 2, 4, 16, 16
    x = jax.random.normal(k_x, (N, C, H, W), dtype=jnp.float32)

    # Deterministic synthetic parameters (Conv2d(2, 1, 7, padding=3) shapes).
    fan_in = 2 * KSIZE * KSIZE
    bound = 1.0 / math.sqrt(fan_in)
    conv_w = jax.random.uniform(k_w, (1, 2, KSIZE, KSIZE),
                                minval=-bound, maxval=bound, dtype=jnp.float32)
    conv_b = jax.random.uniform(k_b, (1,), minval=-bound, maxval=bound,
                                dtype=jnp.float32)

    out = jax.block_until_ready(spatial_gate(x, conv_w, conv_b))
    ref = jax.block_until_ready(spatial_gate_reference(x, conv_w, conv_b))

    assert out.shape == (N, C, H, W)
    max_err = float(jnp.max(jnp.abs(out - ref)))
    assert jnp.allclose(out, ref, atol=2e-5, rtol=2e-5), max_err

    print("KERNEL_OK")
</pallas_src>

<mosaic_0001>
module attributes {stable_mosaic.version = 11 : i64} {
  func.func @_spatial_gate_kernel(%arg0: i32, %arg1: memref<1x4x256xf32, #tpu.memory_space<vmem>>, %arg2: memref<2x256xi32, #tpu.memory_space<vmem>>, %arg3: memref<98xf32, #tpu.memory_space<smem>>, %arg4: memref<1xf32, #tpu.memory_space<smem>>, %arg5: memref<1x4x256xf32, #tpu.memory_space<vmem>>) attributes {dimension_semantics = [#tpu.dimension_semantics<parallel>], iteration_bounds = array<i64: 2>, scalar_prefetch = 0 : i64, scratch_operands = 0 : i64, tpu.core_type = #tpu.core_type<tc>, window_params = [{transform_indices = @transform_0, window_bounds = array<i64: 1, 4, 256>}, {pipeline_mode = #tpu.pipeline_mode<synchronous>, transform_indices = @transform_1, window_bounds = array<i64: 2, 256>}, {transform_indices = @transform_2, window_bounds = array<i64: 98>}, {transform_indices = @transform_3, window_bounds = array<i64: 1>}, {transform_indices = @transform_4, window_bounds = array<i64: 1, 4, 256>}]} {
    %c0 = arith.constant 0 : index
    %c0_0 = arith.constant 0 : index
    %c0_1 = arith.constant 0 : index
    %0 = vector.load %arg1[%c0, %c0_0, %c0_1] : memref<1x4x256xf32, #tpu.memory_space<vmem>>, vector<1x4x256xf32>
    %1 = vector.shape_cast %0 : vector<1x4x256xf32> to vector<4x256xf32>
    %cst = arith.constant dense<0xFF800000> : vector<256xf32>
    %2 = vector.multi_reduction <maximumf>, %1, %cst [0] : vector<4x256xf32> to vector<256xf32>
    %3 = vector.shape_cast %2 : vector<256xf32> to vector<1x256xf32>
    %cst_2 = arith.constant dense<0.000000e+00> : vector<256xf32>
    %4 = vector.multi_reduction <add>, %1, %cst_2 [0] : vector<4x256xf32> to vector<256xf32>
    %5 = vector.shape_cast %4 : vector<256xf32> to vector<1x256xf32>
    %cst_3 = arith.constant 2.500000e-01 : f32
    %6 = vector.broadcast %cst_3 : f32 to vector<1x256xf32>
    %7 = arith.mulf %5, %6 : vector<1x256xf32>
    %c0_4 = arith.constant 0 : index
    %c0_5 = arith.constant 0 : index
    %8 = vector.load %arg2[%c0_4, %c0_5] : memref<2x256xi32, #tpu.memory_space<vmem>>, vector<1x256xi32>
    %c1 = arith.constant 1 : index
    %c0_6 = arith.constant 0 : index
    %9 = vector.load %arg2[%c1, %c0_6] : memref<2x256xi32, #tpu.memory_space<vmem>>, vector<1x256xi32>
    %c3_i32 = arith.constant 3 : i32
    %10 = tpu.dynamic_rotate %3 by %c3_i32 dim 1 : vector<1x256xf32>, i32 -> vector<1x256xf32>
    %c-3_i32 = arith.constant -3 : i32
    %11 = vector.broadcast %c-3_i32 : i32 to vector<1x256xi32>
    %12 = arith.addi %8, %11 : vector<1x256xi32>
    %c0_i32 = arith.constant 0 : i32
    %13 = vector.broadcast %c0_i32 : i32 to vector<1x256xi32>
    %14 = arith.cmpi sge, %12, %13 : vector<1x256xi32>
    %c-3_i32_7 = arith.constant -3 : i32
    %15 = vector.broadcast %c-3_i32_7 : i32 to vector<1x256xi32>
    %16 = arith.addi %8, %15 : vector<1x256xi32>
    %c16_i32 = arith.constant 16 : i32
    %17 = vector.broadcast %c16_i32 : i32 to vector<1x256xi32>
    %18 = arith.cmpi slt, %16, %17 : vector<1x256xi32>
    %19 = arith.andi %14, %18 : vector<1x256xi1>
    %cst_8 = arith.constant 0.000000e+00 : f32
    %20 = vector.broadcast %cst_8 : f32 to vector<1x256xf32>
    %21 = arith.select %19, %10, %20 : vector<1x256xi1>, vector<1x256xf32>
    %c2_i32 = arith.constant 2 : i32
    %22 = tpu.dynamic_rotate %3 by %c2_i32 dim 1 : vector<1x256xf32>, i32 -> vector<1x256xf32>
    %c-2_i32 = arith.constant -2 : i32
    %23 = vector.broadcast %c-2_i32 : i32 to vector<1x256xi32>
    %24 = arith.addi %8, %23 : vector<1x256xi32>
    %c0_i32_9 = arith.constant 0 : i32
    %25 = vector.broadcast %c0_i32_9 : i32 to vector<1x256xi32>
    %26 = arith.cmpi sge, %24, %25 : vector<1x256xi32>
    %c-2_i32_10 = arith.constant -2 : i32
    %27 = vector.broadcast %c-2_i32_10 : i32 to vector<1x256xi32>
    %28 = arith.addi %8, %27 : vector<1x256xi32>
    %c16_i32_11 = arith.constant 16 : i32
    %29 = vector.broadcast %c16_i32_11 : i32 to vector<1x256xi32>
    %30 = arith.cmpi slt, %28, %29 : vector<1x256xi32>
    %31 = arith.andi %26, %30 : vector<1x256xi1>
    %cst_12 = arith.constant 0.000000e+00 : f32
    %32 = vector.broadcast %cst_12 : f32 to vector<1x256xf32>
    %33 = arith.select %31, %22, %32 : vector<1x256xi1>, vector<1x256xf32>
    %c1_i32 = arith.constant 1 : i32
    %34 = tpu.dynamic_rotate %3 by %c1_i32 dim 1 : vector<1x256xf32>, i32 -> vector<1x256xf32>
    %c-1_i32 = arith.constant -1 : i32
    %35 = vector.broadcast %c-1_i32 : i32 to vector<1x256xi32>
    %36 = arith.addi %8, %35 : vector<1x256xi32>
    %c0_i32_13 = arith.constant 0 : i32
    %37 = vector.broadcast %c0_i32_13 : i32 to vector<1x256xi32>
    %38 = arith.cmpi sge, %36, %37 : vector<1x256xi32>
    %c-1_i32_14 = arith.constant -1 : i32
    %39 = vector.broadcast %c-1_i32_14 : i32 to vector<1x256xi32>
    %40 = arith.addi %8, %39 : vector<1x256xi32>
    %c16_i32_15 = arith.constant 16 : i32
    %41 = vector.broadcast %c16_i32_15 : i32 to vector<1x256xi32>
    %42 = arith.cmpi slt, %40, %41 : vector<1x256xi32>
    %43 = arith.andi %38, %42 : vector<1x256xi1>
    %cst_16 = arith.constant 0.000000e+00 : f32
    %44 = vector.broadcast %cst_16 : f32 to vector<1x256xf32>
    %45 = arith.select %43, %34, %44 : vector<1x256xi1>, vector<1x256xf32>
    %c255_i32 = arith.constant 255 : i32
    %46 = tpu.dynamic_rotate %3 by %c255_i32 dim 1 : vector<1x256xf32>, i32 -> vector<1x256xf32>
    %c1_i32_17 = arith.constant 1 : i32
    %47 = vector.broadcast %c1_i32_17 : i32 to vector<1x256xi32>
    %48 = arith.addi %8, %47 : vector<1x256xi32>
    %c0_i32_18 = arith.constant 0 : i32
    %49 = vector.broadcast %c0_i32_18 : i32 to vector<1x256xi32>
    %50 = arith.cmpi sge, %48, %49 : vector<1x256xi32>
    %c1_i32_19 = arith.constant 1 : i32
    %51 = vector.broadcast %c1_i32_19 : i32 to vector<1x256xi32>
    %52 = arith.addi %8, %51 : vector<1x256xi32>
    %c16_i32_20 = arith.constant 16 : i32
    %53 = vector.broadcast %c16_i32_20 : i32 to vector<1x256xi32>
    %54 = arith.cmpi slt, %52, %53 : vector<1x256xi32>
    %55 = arith.andi %50, %54 : vector<1x256xi1>
    %cst_21 = arith.constant 0.000000e+00 : f32
    %56 = vector.broadcast %cst_21 : f32 to vector<1x256xf32>
    %57 = arith.select %55, %46, %56 : vector<1x256xi1>, vector<1x256xf32>
    %c254_i32 = arith.constant 254 : i32
    %58 = tpu.dynamic_rotate %3 by %c254_i32 dim 1 : vector<1x256xf32>, i32 -> vector<1x256xf32>
    %c2_i32_22 = arith.constant 2 : i32
    %59 = vector.broadcast %c2_i32_22 : i32 to vector<1x256xi32>
    %60 = arith.addi %8, %59 : vector<1x256xi32>
    %c0_i32_23 = arith.constant 0 : i32
    %61 = vector.broadcast %c0_i32_23 : i32 to vector<1x256xi32>
    %62 = arith.cmpi sge, %60, %61 : vector<1x256xi32>
    %c2_i32_24 = arith.constant 2 : i32
    %63 = vector.broadcast %c2_i32_24 : i32 to vector<1x256xi32>
    %64 = arith.addi %8, %63 : vector<1x256xi32>
    %c16_i32_25 = arith.constant 16 : i32
    %65 = vector.broadcast %c16_i32_25 : i32 to vector<1x256xi32>
    %66 = arith.cmpi slt, %64, %65 : vector<1x256xi32>
    %67 = arith.andi %62, %66 : vector<1x256xi1>
    %cst_26 = arith.constant 0.000000e+00 : f32
    %68 = vector.broadcast %cst_26 : f32 to vector<1x256xf32>
    %69 = arith.select %67, %58, %68 : vector<1x256xi1>, vector<1x256xf32>
    %c253_i32 = arith.constant 253 : i32
    %70 = tpu.dynamic_rotate %3 by %c253_i32 dim 1 : vector<1x256xf32>, i32 -> vector<1x256xf32>
    %c3_i32_27 = arith.constant 3 : i32
    %71 = vector.broadcast %c3_i32_27 : i32 to vector<1x256xi32>
    %72 = arith.addi %8, %71 : vector<1x256xi32>
    %c0_i32_28 = arith.constant 0 : i32
    %73 = vector.broadcast %c0_i32_28 : i32 to vector<1x256xi32>
    %74 = arith.cmpi sge, %72, %73 : vector<1x256xi32>
    %c3_i32_29 = arith.constant 3 : i32
    %75 = vector.broadcast %c3_i32_29 : i32 to vector<1x256xi32>
    %76 = arith.addi %8, %75 : vector<1x256xi32>
    %c16_i32_30 = arith.constant 16 : i32
    %77 = vector.broadcast %c16_i32_30 : i32 to vector<1x256xi32>
    %78 = arith.cmpi slt, %76, %77 : vector<1x256xi32>
    %79 = arith.andi %74, %78 : vector<1x256xi1>
    %cst_31 = arith.constant 0.000000e+00 : f32
    %80 = vector.broadcast %cst_31 : f32 to vector<1x256xf32>
    %81 = arith.select %79, %70, %80 : vector<1x256xi1>, vector<1x256xf32>
    %c0_32 = arith.constant 0 : index
    %82 = memref.load %arg3[%c0_32] : memref<98xf32, #tpu.memory_space<smem>>
    %83 = vector.broadcast %82 : f32 to vector<1x256xf32>
    %84 = arith.mulf %21, %83 : vector<1x256xf32>
    %c1_33 = arith.constant 1 : index
    %85 = memref.load %arg3[%c1_33] : memref<98xf32, #tpu.memory_space<smem>>
    %86 = vector.broadcast %85 : f32 to vector<1x256xf32>
    %87 = arith.mulf %33, %86 : vector<1x256xf32>
    %88 = arith.addf %84, %87 : vector<1x256xf32>
    %c2 = arith.constant 2 : index
    %89 = memref.load %arg3[%c2] : memref<98xf32, #tpu.memory_space<smem>>
    %90 = vector.broadcast %89 : f32 to vector<1x256xf32>
    %91 = arith.mulf %45, %90 : vector<1x256xf32>
    %92 = arith.addf %88, %91 : vector<1x256xf32>
    %c3 = arith.constant 3 : index
    %93 = memref.load %arg3[%c3] : memref<98xf32, #tpu.memory_space<smem>>
    %94 = vector.broadcast %93 : f32 to vector<1x256xf32>
    %95 = arith.mulf %3, %94 : vector<1x256xf32>
    %96 = arith.addf %92, %95 : vector<1x256xf32>
    %c4 = arith.constant 4 : index
    %97 = memref.load %arg3[%c4] : memref<98xf32, #tpu.memory_space<smem>>
    %98 = vector.broadcast %97 : f32 to vector<1x256xf32>
    %99 = arith.mulf %57, %98 : vector<1x256xf32>
    %100 = arith.addf %96, %99 : vector<1x256xf32>
    %c5 = arith.constant 5 : index
    %101 = memref.load %arg3[%c5] : memref<98xf32, #tpu.memory_space<smem>>
    %102 = vector.broadcast %101 : f32 to vector<1x256xf32>
    %103 = arith.mulf %69, %102 : vector<1x256xf32>
    %104 = arith.addf %100, %103 : vector<1x256xf32>
    %c6 = arith.constant 6 : index
    %105 = memref.load %arg3[%c6] : memref<98xf32, #tpu.memory_space<smem>>
    %106 = vector.broadcast %105 : f32 to vector<1x256xf32>
    %107 = arith.mulf %81, %106 : vector<1x256xf32>
    %108 = arith.addf %104, %107 : vector<1x256xf32>
    %c48_i32 = arith.constant 48 : i32
    %109 = tpu.dynamic_rotate %108 by %c48_i32 dim 1 : vector<1x256xf32>, i32 -> vector<1x256xf32>
    %c-3_i32_34 = arith.constant -3 : i32
    %110 = vector.broadcast %c-3_i32_34 : i32 to vector<1x256xi32>
    %111 = arith.addi %9, %110 : vector<1x256xi32>
    %c0_i32_35 = arith.constant 0 : i32
    %112 = vector.broadcast %c0_i32_35 : i32 to vector<1x256xi32>
    %113 = arith.cmpi sge, %111, %112 : vector<1x256xi32>
    %c-3_i32_36 = arith.constant -3 : i32
    %114 = vector.broadcast %c-3_i32_36 : i32 to vector<1x256xi32>
    %115 = arith.addi %9, %114 : vector<1x256xi32>
    %c16_i32_37 = arith.constant 16 : i32
    %116 = vector.broadcast %c16_i32_37 : i32 to vector<1x256xi32>
    %117 = arith.cmpi slt, %115, %116 : vector<1x256xi32>
    %118 = arith.andi %113, %117 : vector<1x256xi1>
    %cst_38 = arith.constant 0.000000e+00 : f32
    %119 = vector.broadcast %cst_38 : f32 to vector<1x256xf32>
    %120 = arith.select %118, %109, %119 : vector<1x256xi1>, vector<1x256xf32>
    %c7 = arith.constant 7 : index
    %121 = memref.load %arg3[%c7] : memref<98xf32, #tpu.memory_space<smem>>
    %122 = vector.broadcast %121 : f32 to vector<1x256xf32>
    %123 = arith.mulf %21, %122 : vector<1x256xf32>
    %c8 = arith.constant 8 : index
    %124 = memref.load %arg3[%c8] : memref<98xf32, #tpu.memory_space<smem>>
    %125 = vector.broadcast %124 : f32 to vector<1x256xf32>
    %126 = arith.mulf %33, %125 : vector<1x256xf32>
    %127 = arith.addf %123, %126 : vector<1x256xf32>
    %c9 = arith.constant 9 : index
    %128 = memref.load %arg3[%c9] : memref<98xf32, #tpu.memory_space<smem>>
    %129 = vector.broadcast %128 : f32 to vector<1x256xf32>
    %130 = arith.mulf %45, %129 : vector<1x256xf32>
    %131 = arith.addf %127, %130 : vector<1x256xf32>
    %c10 = arith.constant 10 : index
    %132 = memref.load %arg3[%c10] : memref<98xf32, #tpu.memory_space<smem>>
    %133 = vector.broadcast %132 : f32 to vector<1x256xf32>
    %134 = arith.mulf %3, %133 : vector<1x256xf32>
    %135 = arith.addf %131, %134 : vector<1x256xf32>
    %c11 = arith.constant 11 : index
    %136 = memref.load %arg3[%c11] : memref<98xf32, #tpu.memory_space<smem>>
    %137 = vector.broadcast %136 : f32 to vector<1x256xf32>
    %138 = arith.mulf %57, %137 : vector<1x256xf32>
    %139 = arith.addf %135, %138 : vector<1x256xf32>
    %c12 = arith.constant 12 : index
    %140 = memref.load %arg3[%c12] : memref<98xf32, #tpu.memory_space<smem>>
    %141 = vector.broadcast %140 : f32 to vector<1x256xf32>
    %142 = arith.mulf %69, %141 : vector<1x256xf32>
    %143 = arith.addf %139, %142 : vector<1x256xf32>
    %c13 = arith.constant 13 : index
    %144 = memref.load %arg3[%c13] : memref<98xf32, #tpu.memory_space<smem>>
    %145 = vector.broadcast %144 : f32 to vector<1x256xf32>
    %146 = arith.mulf %81, %145 : vector<1x256xf32>
    %147 = arith.addf %143, %146 : vector<1x256xf32>
    %c32_i32 = arith.constant 32 : i32
    %148 = tpu.dynamic_rotate %147 by %c32_i32 dim 1 : vector<1x256xf32>, i32 -> vector<1x256xf32>
    %c-2_i32_39 = arith.constant -2 : i32
    %149 = vector.broadcast %c-2_i32_39 : i32 to vector<1x256xi32>
    %150 = arith.addi %9, %149 : vector<1x256xi32>
    %c0_i32_40 = arith.constant 0 : i32
    %151 = vector.broadcast %c0_i32_40 : i32 to vector<1x256xi32>
    %152 = arith.cmpi sge, %150, %151 : vector<1x256xi32>
    %c-2_i32_41 = arith.constant -2 : i32
    %153 = vector.broadcast %c-2_i32_41 : i32 to vector<1x256xi32>
    %154 = arith.addi %9, %153 : vector<1x256xi32>
    %c16_i32_42 = arith.constant 16 : i32
    %155 = vector.broadcast %c16_i32_42 : i32 to vector<1x256xi32>
    %156 = arith.cmpi slt, %154, %155 : vector<1x256xi32>
    %157 = arith.andi %152, %156 : vector<1x256xi1>
    %cst_43 = arith.constant 0.000000e+00 : f32
    %158 = vector.broadcast %cst_43 : f32 to vector<1x256xf32>
    %159 = arith.select %157, %148, %158 : vector<1x256xi1>, vector<1x256xf32>
    %160 = arith.addf %120, %159 : vector<1x256xf32>
    %c14 = arith.constant 14 : index
    %161 = memref.load %arg3[%c14] : memref<98xf32, #tpu.memory_space<smem>>
    %162 = vector.broadcast %161 : f32 to vector<1x256xf32>
    %163 = arith.mulf %21, %162 : vector<1x256xf32>
    %c15 = arith.constant 15 : index
    %164 = memref.load %arg3[%c15] : memref<98xf32, #tpu.memory_space<smem>>
    %165 = vector.broadcast %164 : f32 to vector<1x256xf32>
    %166 = arith.mulf %33, %165 : vector<1x256xf32>
    %167 = arith.addf %163, %166 : vector<1x256xf32>
    %c16 = arith.constant 16 : index
    %168 = memref.load %arg3[%c16] : memref<98xf32, #tpu.memory_space<smem>>
    %169 = vector.broadcast %168 : f32 to vector<1x256xf32>
    %170 = arith.mulf %45, %169 : vector<1x256xf32>
    %171 = arith.addf %167, %170 : vector<1x256xf32>
    %c17 = arith.constant 17 : index
    %172 = memref.load %arg3[%c17] : memref<98xf32, #tpu.memory_space<smem>>
    %173 = vector.broadcast %172 : f32 to vector<1x256xf32>
    %174 = arith.mulf %3, %173 : vector<1x256xf32>
    %175 = arith.addf %171, %174 : vector<1x256xf32>
    %c18 = arith.constant 18 : index
    %176 = memref.load %arg3[%c18] : memref<98xf32, #tpu.memory_space<smem>>
    %177 = vector.broadcast %176 : f32 to vector<1x256xf32>
    %178 = arith.mulf %57, %177 : vector<1x256xf32>
    %179 = arith.addf %175, %178 : vector<1x256xf32>
    %c19 = arith.constant 19 : index
    %180 = memref.load %arg3[%c19] : memref<98xf32, #tpu.memory_space<smem>>
    %181 = vector.broadcast %180 : f32 to vector<1x256xf32>
    %182 = arith.mulf %69, %181 : vector<1x256xf32>
    %183 = arith.addf %179, %182 : vector<1x256xf32>
    %c20 = arith.constant 20 : index
    %184 = memref.load %arg3[%c20] : memref<98xf32, #tpu.memory_space<smem>>
    %185 = vector.broadcast %184 : f32 to vector<1x256xf32>
    %186 = arith.mulf %81, %185 : vector<1x256xf32>
    %187 = arith.addf %183, %186 : vector<1x256xf32>
    %c16_i32_44 = arith.constant 16 : i32
    %188 = tpu.dynamic_rotate %187 by %c16_i32_44 dim 1 : vector<1x256xf32>, i32 -> vector<1x256xf32>
    %c-1_i32_45 = arith.constant -1 : i32
    %189 = vector.broadcast %c-1_i32_45 : i32 to vector<1x256xi32>
    %190 = arith.addi %9, %189 : vector<1x256xi32>
    %c0_i32_46 = arith.constant 0 : i32
    %191 = vector.broadcast %c0_i32_46 : i32 to vector<1x256xi32>
    %192 = arith.cmpi sge, %190, %191 : vector<1x256xi32>
    %c-1_i32_47 = arith.constant -1 : i32
    %193 = vector.broadcast %c-1_i32_47 : i32 to vector<1x256xi32>
    %194 = arith.addi %9, %193 : vector<1x256xi32>
    %c16_i32_48 = arith.constant 16 : i32
    %195 = vector.broadcast %c16_i32_48 : i32 to vector<1x256xi32>
    %196 = arith.cmpi slt, %194, %195 : vector<1x256xi32>
    %197 = arith.andi %192, %196 : vector<1x256xi1>
    %cst_49 = arith.constant 0.000000e+00 : f32
    %198 = vector.broadcast %cst_49 : f32 to vector<1x256xf32>
    %199 = arith.select %197, %188, %198 : vector<1x256xi1>, vector<1x256xf32>
    %200 = arith.addf %160, %199 : vector<1x256xf32>
    %c21 = arith.constant 21 : index
    %201 = memref.load %arg3[%c21] : memref<98xf32, #tpu.memory_space<smem>>
    %202 = vector.broadcast %201 : f32 to vector<1x256xf32>
    %203 = arith.mulf %21, %202 : vector<1x256xf32>
    %c22 = arith.constant 22 : index
    %204 = memref.load %arg3[%c22] : memref<98xf32, #tpu.memory_space<smem>>
    %205 = vector.broadcast %204 : f32 to vector<1x256xf32>
    %206 = arith.mulf %33, %205 : vector<1x256xf32>
    %207 = arith.addf %203, %206 : vector<1x256xf32>
    %c23 = arith.constant 23 : index
    %208 = memref.load %arg3[%c23] : memref<98xf32, #tpu.memory_space<smem>>
    %209 = vector.broadcast %208 : f32 to vector<1x256xf32>
    %210 = arith.mulf %45, %209 : vector<1x256xf32>
    %211 = arith.addf %207, %210 : vector<1x256xf32>
    %c24 = arith.constant 24 : index
    %212 = memref.load %arg3[%c24] : memref<98xf32, #tpu.memory_space<smem>>
    %213 = vector.broadcast %212 : f32 to vector<1x256xf32>
    %214 = arith.mulf %3, %213 : vector<1x256xf32>
    %215 = arith.addf %211, %214 : vector<1x256xf32>
    %c25 = arith.constant 25 : index
    %216 = memref.load %arg3[%c25] : memref<98xf32, #tpu.memory_space<smem>>
    %217 = vector.broadcast %216 : f32 to vector<1x256xf32>
    %218 = arith.mulf %57, %217 : vector<1x256xf32>
    %219 = arith.addf %215, %218 : vector<1x256xf32>
    %c26 = arith.constant 26 : index
    %220 = memref.load %arg3[%c26] : memref<98xf32, #tpu.memory_space<smem>>
    %221 = vector.broadcast %220 : f32 to vector<1x256xf32>
    %222 = arith.mulf %69, %221 : vector<1x256xf32>
    %223 = arith.addf %219, %222 : vector<1x256xf32>
    %c27 = arith.constant 27 : index
    %224 = memref.load %arg3[%c27] : memref<98xf32, #tpu.memory_space<smem>>
    %225 = vector.broadcast %224 : f32 to vector<1x256xf32>
    %226 = arith.mulf %81, %225 : vector<1x256xf32>
    %227 = arith.addf %223, %226 : vector<1x256xf32>
    %228 = arith.addf %200, %227 : vector<1x256xf32>
    %c28 = arith.constant 28 : index
    %229 = memref.load %arg3[%c28] : memref<98xf32, #tpu.memory_space<smem>>
    %230 = vector.broadcast %229 : f32 to vector<1x256xf32>
    %231 = arith.mulf %21, %230 : vector<1x256xf32>
    %c29 = arith.constant 29 : index
    %232 = memref.load %arg3[%c29] : memref<98xf32, #tpu.memory_space<smem>>
    %233 = vector.broadcast %232 : f32 to vector<1x256xf32>
    %234 = arith.mulf %33, %233 : vector<1x256xf32>
    %235 = arith.addf %231, %234 : vector<1x256xf32>
    %c30 = arith.constant 30 : index
    %236 = memref.load %arg3[%c30] : memref<98xf32, #tpu.memory_space<smem>>
    %237 = vector.broadcast %236 : f32 to vector<1x256xf32>
    %238 = arith.mulf %45, %237 : vector<1x256xf32>
    %239 = arith.addf %235, %238 : vector<1x256xf32>
    %c31 = arith.constant 31 : index
    %240 = memref.load %arg3[%c31] : memref<98xf32, #tpu.memory_space<smem>>
    %241 = vector.broadcast %240 : f32 to vector<1x256xf32>
    %242 = arith.mulf %3, %241 : vector<1x256xf32>
    %243 = arith.addf %239, %242 : vector<1x256xf32>
    %c32 = arith.constant 32 : index
    %244 = memref.load %arg3[%c32] : memref<98xf32, #tpu.memory_space<smem>>
    %245 = vector.broadcast %244 : f32 to vector<1x256xf32>
    %246 = arith.mulf %57, %245 : vector<1x256xf32>
    %247 = arith.addf %243, %246 : vector<1x256xf32>
    %c33 = arith.constant 33 : index
    %248 = memref.load %arg3[%c33] : memref<98xf32, #tpu.memory_space<smem>>
    %249 = vector.broadcast %248 : f32 to vector<1x256xf32>
    %250 = arith.mulf %69, %249 : vector<1x256xf32>
    %251 = arith.addf %247, %250 : vector<1x256xf32>
    %c34 = arith.constant 34 : index
    %252 = memref.load %arg3[%c34] : memref<98xf32, #tpu.memory_space<smem>>
    %253 = vector.broadcast %252 : f32 to vector<1x256xf32>
    %254 = arith.mulf %81, %253 : vector<1x256xf32>
    %255 = arith.addf %251, %254 : vector<1x256xf32>
    %c240_i32 = arith.constant 240 : i32
    %256 = tpu.dynamic_rotate %255 by %c240_i32 dim 1 : vector<1x256xf32>, i32 -> vector<1x256xf32>
    %c1_i32_50 = arith.constant 1 : i32
    %257 = vector.broadcast %c1_i32_50 : i32 to vector<1x256xi32>
    %258 = arith.addi %9, %257 : vector<1x256xi32>
    %c0_i32_51 = arith.constant 0 : i32
    %259 = vector.broadcast %c0_i32_51 : i32 to vector<1x256xi32>
    %260 = arith.cmpi sge, %258, %259 : vector<1x256xi32>
    %c1_i32_52 = arith.constant 1 : i32
    %261 = vector.broadcast %c1_i32_52 : i32 to vector<1x256xi32>
    %262 = arith.addi %9, %261 : vector<1x256xi32>
    %c16_i32_53 = arith.constant 16 : i32
    %263 = vector.broadcast %c16_i32_53 : i32 to vector<1x256xi32>
    %264 = arith.cmpi slt, %262, %263 : vector<1x256xi32>
    %265 = arith.andi %260, %264 : vector<1x256xi1>
    %cst_54 = arith.constant 0.000000e+00 : f32
    %266 = vector.broadcast %cst_54 : f32 to vector<1x256xf32>
    %267 = arith.select %265, %256, %266 : vector<1x256xi1>, vector<1x256xf32>
    %268 = arith.addf %228, %267 : vector<1x256xf32>
    %c35 = arith.constant 35 : index
    %269 = memref.load %arg3[%c35] : memref<98xf32, #tpu.memory_space<smem>>
    %270 = vector.broadcast %269 : f32 to vector<1x256xf32>
    %271 = arith.mulf %21, %270 : vector<1x256xf32>
    %c36 = arith.constant 36 : index
    %272 = memref.load %arg3[%c36] : memref<98xf32, #tpu.memory_space<smem>>
    %273 = vector.broadcast %272 : f32 to vector<1x256xf32>
    %274 = arith.mulf %33, %273 : vector<1x256xf32>
    %275 = arith.addf %271, %274 : vector<1x256xf32>
    %c37 = arith.constant 37 : index
    %276 = memref.load %arg3[%c37] : memref<98xf32, #tpu.memory_space<smem>>
    %277 = vector.broadcast %276 : f32 to vector<1x256xf32>
    %278 = arith.mulf %45, %277 : vector<1x256xf32>
    %279 = arith.addf %275, %278 : vector<1x256xf32>
    %c38 = arith.constant 38 : index
    %280 = memref.load %arg3[%c38] : memref<98xf32, #tpu.memory_space<smem>>
    %281 = vector.broadcast %280 : f32 to vector<1x256xf32>
    %282 = arith.mulf %3, %281 : vector<1x256xf32>
    %283 = arith.addf %279, %282 : vector<1x256xf32>
    %c39 = arith.constant 39 : index
    %284 = memref.load %arg3[%c39] : memref<98xf32, #tpu.memory_space<smem>>
    %285 = vector.broadcast %284 : f32 to vector<1x256xf32>
    %286 = arith.mulf %57, %285 : vector<1x256xf32>
    %287 = arith.addf %283, %286 : vector<1x256xf32>
    %c40 = arith.constant 40 : index
    %288 = memref.load %arg3[%c40] : memref<98xf32, #tpu.memory_space<smem>>
    %289 = vector.broadcast %288 : f32 to vector<1x256xf32>
    %290 = arith.mulf %69, %289 : vector<1x256xf32>
    %291 = arith.addf %287, %290 : vector<1x256xf32>
    %c41 = arith.constant 41 : index
    %292 = memref.load %arg3[%c41] : memref<98xf32, #tpu.memory_space<smem>>
    %293 = vector.broadcast %292 : f32 to vector<1x256xf32>
    %294 = arith.mulf %81, %293 : vector<1x256xf32>
    %295 = arith.addf %291, %294 : vector<1x256xf32>
    %c224_i32 = arith.constant 224 : i32
    %296 = tpu.dynamic_rotate %295 by %c224_i32 dim 1 : vector<1x256xf32>, i32 -> vector<1x256xf32>
    %c2_i32_55 = arith.constant 2 : i32
    %297 = vector.broadcast %c2_i32_55 : i32 to vector<1x256xi32>
    %298 = arith.addi %9, %297 : vector<1x256xi32>
    %c0_i32_56 = arith.constant 0 : i32
    %299 = vector.broadcast %c0_i32_56 : i32 to vector<1x256xi32>
    %300 = arith.cmpi sge, %298, %299 : vector<1x256xi32>
    %c2_i32_57 = arith.constant 2 : i32
    %301 = vector.broadcast %c2_i32_57 : i32 to vector<1x256xi32>
    %302 = arith.addi %9, %301 : vector<1x256xi32>
    %c16_i32_58 = arith.constant 16 : i32
    %303 = vector.broadcast %c16_i32_58 : i32 to vector<1x256xi32>
    %304 = arith.cmpi slt, %302, %303 : vector<1x256xi32>
    %305 = arith.andi %300, %304 : vector<1x256xi1>
    %cst_59 = arith.constant 0.000000e+00 : f32
    %306 = vector.broadcast %cst_59 : f32 to vector<1x256xf32>
    %307 = arith.select %305, %296, %306 : vector<1x256xi1>, vector<1x256xf32>
    %308 = arith.addf %268, %307 : vector<1x256xf32>
    %c42 = arith.constant 42 : index
    %309 = memref.load %arg3[%c42] : memref<98xf32, #tpu.memory_space<smem>>
    %310 = vector.broadcast %309 : f32 to vector<1x256xf32>
    %311 = arith.mulf %21, %310 : vector<1x256xf32>
    %c43 = arith.constant 43 : index
    %312 = memref.load %arg3[%c43] : memref<98xf32, #tpu.memory_space<smem>>
    %313 = vector.broadcast %312 : f32 to vector<1x256xf32>
    %314 = arith.mulf %33, %313 : vector<1x256xf32>
    %315 = arith.addf %311, %314 : vector<1x256xf32>
    %c44 = arith.constant 44 : index
    %316 = memref.load %arg3[%c44] : memref<98xf32, #tpu.memory_space<smem>>
    %317 = vector.broadcast %316 : f32 to vector<1x256xf32>
    %318 = arith.mulf %45, %317 : vector<1x256xf32>
    %319 = arith.addf %315, %318 : vector<1x256xf32>
    %c45 = arith.constant 45 : index
    %320 = memref.load %arg3[%c45] : memref<98xf32, #tpu.memory_space<smem>>
    %321 = vector.broadcast %320 : f32 to vector<1x256xf32>
    %322 = arith.mulf %3, %321 : vector<1x256xf32>
    %323 = arith.addf %319, %322 : vector<1x256xf32>
    %c46 = arith.constant 46 : index
    %324 = memref.load %arg3[%c46] : memref<98xf32, #tpu.memory_space<smem>>
    %325 = vector.broadcast %324 : f32 to vector<1x256xf32>
    %326 = arith.mulf %57, %325 : vector<1x256xf32>
    %327 = arith.addf %323, %326 : vector<1x256xf32>
    %c47 = arith.constant 47 : index
    %328 = memref.load %arg3[%c47] : memref<98xf32, #tpu.memory_space<smem>>
    %329 = vector.broadcast %328 : f32 to vector<1x256xf32>
    %330 = arith.mulf %69, %329 : vector<1x256xf32>
    %331 = arith.addf %327, %330 : vector<1x256xf32>
    %c48 = arith.constant 48 : index
    %332 = memref.load %arg3[%c48] : memref<98xf32, #tpu.memory_space<smem>>
    %333 = vector.broadcast %332 : f32 to vector<1x256xf32>
    %334 = arith.mulf %81, %333 : vector<1x256xf32>
    %335 = arith.addf %331, %334 : vector<1x256xf32>
    %c208_i32 = arith.constant 208 : i32
    %336 = tpu.dynamic_rotate %335 by %c208_i32 dim 1 : vector<1x256xf32>, i32 -> vector<1x256xf32>
    %c3_i32_60 = arith.constant 3 : i32
    %337 = vector.broadcast %c3_i32_60 : i32 to vector<1x256xi32>
    %338 = arith.addi %9, %337 : vector<1x256xi32>
    %c0_i32_61 = arith.constant 0 : i32
    %339 = vector.broadcast %c0_i32_61 : i32 to vector<1x256xi32>
    %340 = arith.cmpi sge, %338, %339 : vector<1x256xi32>
    %c3_i32_62 = arith.constant 3 : i32
    %341 = vector.broadcast %c3_i32_62 : i32 to vector<1x256xi32>
    %342 = arith.addi %9, %341 : vector<1x256xi32>
    %c16_i32_63 = arith.constant 16 : i32
    %343 = vector.broadcast %c16_i32_63 : i32 to vector<1x256xi32>
    %344 = arith.cmpi slt, %342, %343 : vector<1x256xi32>
    %345 = arith.andi %340, %344 : vector<1x256xi1>
    %cst_64 = arith.constant 0.000000e+00 : f32
    %346 = vector.broadcast %cst_64 : f32 to vector<1x256xf32>
    %347 = arith.select %345, %336, %346 : vector<1x256xi1>, vector<1x256xf32>
    %348 = arith.addf %308, %347 : vector<1x256xf32>
    %c3_i32_65 = arith.constant 3 : i32
    %349 = tpu.dynamic_rotate %7 by %c3_i32_65 dim 1 : vector<1x256xf32>, i32 -> vector<1x256xf32>
    %c-3_i32_66 = arith.constant -3 : i32
    %350 = vector.broadcast %c-3_i32_66 : i32 to vector<1x256xi32>
    %351 = arith.addi %8, %350 : vector<1x256xi32>
    %c0_i32_67 = arith.constant 0 : i32
    %352 = vector.broadcast %c0_i32_67 : i32 to vector<1x256xi32>
    %353 = arith.cmpi sge, %351, %352 : vector<1x256xi32>
    %c-3_i32_68 = arith.constant -3 : i32
    %354 = vector.broadcast %c-3_i32_68 : i32 to vector<1x256xi32>
    %355 = arith.addi %8, %354 : vector<1x256xi32>
    %c16_i32_69 = arith.constant 16 : i32
    %356 = vector.broadcast %c16_i32_69 : i32 to vector<1x256xi32>
    %357 = arith.cmpi slt, %355, %356 : vector<1x256xi32>
    %358 = arith.andi %353, %357 : vector<1x256xi1>
    %cst_70 = arith.constant 0.000000e+00 : f32
    %359 = vector.broadcast %cst_70 : f32 to vector<1x256xf32>
    %360 = arith.select %358, %349, %359 : vector<1x256xi1>, vector<1x256xf32>
    %c2_i32_71 = arith.constant 2 : i32
    %361 = tpu.dynamic_rotate %7 by %c2_i32_71 dim 1 : vector<1x256xf32>, i32 -> vector<1x256xf32>
    %c-2_i32_72 = arith.constant -2 : i32
    %362 = vector.broadcast %c-2_i32_72 : i32 to vector<1x256xi32>
    %363 = arith.addi %8, %362 : vector<1x256xi32>
    %c0_i32_73 = arith.constant 0 : i32
    %364 = vector.broadcast %c0_i32_73 : i32 to vector<1x256xi32>
    %365 = arith.cmpi sge, %363, %364 : vector<1x256xi32>
    %c-2_i32_74 = arith.constant -2 : i32
    %366 = vector.broadcast %c-2_i32_74 : i32 to vector<1x256xi32>
    %367 = arith.addi %8, %366 : vector<1x256xi32>
    %c16_i32_75 = arith.constant 16 : i32
    %368 = vector.broadcast %c16_i32_75 : i32 to vector<1x256xi32>
    %369 = arith.cmpi slt, %367, %368 : vector<1x256xi32>
    %370 = arith.andi %365, %369 : vector<1x256xi1>
    %cst_76 = arith.constant 0.000000e+00 : f32
    %371 = vector.broadcast %cst_76 : f32 to vector<1x256xf32>
    %372 = arith.select %370, %361, %371 : vector<1x256xi1>, vector<1x256xf32>
    %c1_i32_77 = arith.constant 1 : i32
    %373 = tpu.dynamic_rotate %7 by %c1_i32_77 dim 1 : vector<1x256xf32>, i32 -> vector<1x256xf32>
    %c-1_i32_78 = arith.constant -1 : i32
    %374 = vector.broadcast %c-1_i32_78 : i32 to vector<1x256xi32>
    %375 = arith.addi %8, %374 : vector<1x256xi32>
    %c0_i32_79 = arith.constant 0 : i32
    %376 = vector.broadcast %c0_i32_79 : i32 to vector<1x256xi32>
    %377 = arith.cmpi sge, %375, %376 : vector<1x256xi32>
    %c-1_i32_80 = arith.constant -1 : i32
    %378 = vector.broadcast %c-1_i32_80 : i32 to vector<1x256xi32>
    %379 = arith.addi %8, %378 : vector<1x256xi32>
    %c16_i32_81 = arith.constant 16 : i32
    %380 = vector.broadcast %c16_i32_81 : i32 to vector<1x256xi32>
    %381 = arith.cmpi slt, %379, %380 : vector<1x256xi32>
    %382 = arith.andi %377, %381 : vector<1x256xi1>
    %cst_82 = arith.constant 0.000000e+00 : f32
    %383 = vector.broadcast %cst_82 : f32 to vector<1x256xf32>
    %384 = arith.select %382, %373, %383 : vector<1x256xi1>, vector<1x256xf32>
    %c255_i32_83 = arith.constant 255 : i32
    %385 = tpu.dynamic_rotate %7 by %c255_i32_83 dim 1 : vector<1x256xf32>, i32 -> vector<1x256xf32>
    %c1_i32_84 = arith.constant 1 : i32
    %386 = vector.broadcast %c1_i32_84 : i32 to vector<1x256xi32>
    %387 = arith.addi %8, %386 : vector<1x256xi32>
    %c0_i32_85 = arith.constant 0 : i32
    %388 = vector.broadcast %c0_i32_85 : i32 to vector<1x256xi32>
    %389 = arith.cmpi sge, %387, %388 : vector<1x256xi32>
    %c1_i32_86 = arith.constant 1 : i32
    %390 = vector.broadcast %c1_i32_86 : i32 to vector<1x256xi32>
    %391 = arith.addi %8, %390 : vector<1x256xi32>
    %c16_i32_87 = arith.constant 16 : i32
    %392 = vector.broadcast %c16_i32_87 : i32 to vector<1x256xi32>
    %393 = arith.cmpi slt, %391, %392 : vector<1x256xi32>
    %394 = arith.andi %389, %393 : vector<1x256xi1>
    %cst_88 = arith.constant 0.000000e+00 : f32
    %395 = vector.broadcast %cst_88 : f32 to vector<1x256xf32>
    %396 = arith.select %394, %385, %395 : vector<1x256xi1>, vector<1x256xf32>
    %c254_i32_89 = arith.constant 254 : i32
    %397 = tpu.dynamic_rotate %7 by %c254_i32_89 dim 1 : vector<1x256xf32>, i32 -> vector<1x256xf32>
    %c2_i32_90 = arith.constant 2 : i32
    %398 = vector.broadcast %c2_i32_90 : i32 to vector<1x256xi32>
    %399 = arith.addi %8, %398 : vector<1x256xi32>
    %c0_i32_91 = arith.constant 0 : i32
    %400 = vector.broadcast %c0_i32_91 : i32 to vector<1x256xi32>
    %401 = arith.cmpi sge, %399, %400 : vector<1x256xi32>
    %c2_i32_92 = arith.constant 2 : i32
    %402 = vector.broadcast %c2_i32_92 : i32 to vector<1x256xi32>
    %403 = arith.addi %8, %402 : vector<1x256xi32>
    %c16_i32_93 = arith.constant 16 : i32
    %404 = vector.broadcast %c16_i32_93 : i32 to vector<1x256xi32>
    %405 = arith.cmpi slt, %403, %404 : vector<1x256xi32>
    %406 = arith.andi %401, %405 : vector<1x256xi1>
    %cst_94 = arith.constant 0.000000e+00 : f32
    %407 = vector.broadcast %cst_94 : f32 to vector<1x256xf32>
    %408 = arith.select %406, %397, %407 : vector<1x256xi1>, vector<1x256xf32>
    %c253_i32_95 = arith.constant 253 : i32
    %409 = tpu.dynamic_rotate %7 by %c253_i32_95 dim 1 : vector<1x256xf32>, i32 -> vector<1x256xf32>
    %c3_i32_96 = arith.constant 3 : i32
    %410 = vector.broadcast %c3_i32_96 : i32 to vector<1x256xi32>
    %411 = arith.addi %8, %410 : vector<1x256xi32>
    %c0_i32_97 = arith.constant 0 : i32
    %412 = vector.broadcast %c0_i32_97 : i32 to vector<1x256xi32>
    %413 = arith.cmpi sge, %411, %412 : vector<1x256xi32>
    %c3_i32_98 = arith.constant 3 : i32
    %414 = vector.broadcast %c3_i32_98 : i32 to vector<1x256xi32>
    %415 = arith.addi %8, %414 : vector<1x256xi32>
    %c16_i32_99 = arith.constant 16 : i32
    %416 = vector.broadcast %c16_i32_99 : i32 to vector<1x256xi32>
    %417 = arith.cmpi slt, %415, %416 : vector<1x256xi32>
    %418 = arith.andi %413, %417 : vector<1x256xi1>
    %cst_100 = arith.constant 0.000000e+00 : f32
    %419 = vector.broadcast %cst_100 : f32 to vector<1x256xf32>
    %420 = arith.select %418, %409, %419 : vector<1x256xi1>, vector<1x256xf32>
    %c49 = arith.constant 49 : index
    %421 = memref.load %arg3[%c49] : memref<98xf32, #tpu.memory_space<smem>>
    %422 = vector.broadcast %421 : f32 to vector<1x256xf32>
    %423 = arith.mulf %360, %422 : vector<1x256xf32>
    %c50 = arith.constant 50 : index
    %424 = memref.load %arg3[%c50] : memref<98xf32, #tpu.memory_space<smem>>
    %425 = vector.broadcast %424 : f32 to vector<1x256xf32>
    %426 = arith.mulf %372, %425 : vector<1x256xf32>
    %427 = arith.addf %423, %426 : vector<1x256xf32>
    %c51 = arith.constant 51 : index
    %428 = memref.load %arg3[%c51] : memref<98xf32, #tpu.memory_space<smem>>
    %429 = vector.broadcast %428 : f32 to vector<1x256xf32>
    %430 = arith.mulf %384, %429 : vector<1x256xf32>
    %431 = arith.addf %427, %430 : vector<1x256xf32>
    %c52 = arith.constant 52 : index
    %432 = memref.load %arg3[%c52] : memref<98xf32, #tpu.memory_space<smem>>
    %433 = vector.broadcast %432 : f32 to vector<1x256xf32>
    %434 = arith.mulf %7, %433 : vector<1x256xf32>
    %435 = arith.addf %431, %434 : vector<1x256xf32>
    %c53 = arith.constant 53 : index
    %436 = memref.load %arg3[%c53] : memref<98xf32, #tpu.memory_space<smem>>
    %437 = vector.broadcast %436 : f32 to vector<1x256xf32>
    %438 = arith.mulf %396, %437 : vector<1x256xf32>
    %439 = arith.addf %435, %438 : vector<1x256xf32>
    %c54 = arith.constant 54 : index
    %440 = memref.load %arg3[%c54] : memref<98xf32, #tpu.memory_space<smem>>
    %441 = vector.broadcast %440 : f32 to vector<1x256xf32>
    %442 = arith.mulf %408, %441 : vector<1x256xf32>
    %443 = arith.addf %439, %442 : vector<1x256xf32>
    %c55 = arith.constant 55 : index
    %444 = memref.load %arg3[%c55] : memref<98xf32, #tpu.memory_space<smem>>
    %445 = vector.broadcast %444 : f32 to vector<1x256xf32>
    %446 = arith.mulf %420, %445 : vector<1x256xf32>
    %447 = arith.addf %443, %446 : vector<1x256xf32>
    %c48_i32_101 = arith.constant 48 : i32
    %448 = tpu.dynamic_rotate %447 by %c48_i32_101 dim 1 : vector<1x256xf32>, i32 -> vector<1x256xf32>
    %c-3_i32_102 = arith.constant -3 : i32
    %449 = vector.broadcast %c-3_i32_102 : i32 to vector<1x256xi32>
    %450 = arith.addi %9, %449 : vector<1x256xi32>
    %c0_i32_103 = arith.constant 0 : i32
    %451 = vector.broadcast %c0_i32_103 : i32 to vector<1x256xi32>
    %452 = arith.cmpi sge, %450, %451 : vector<1x256xi32>
    %c-3_i32_104 = arith.constant -3 : i32
    %453 = vector.broadcast %c-3_i32_104 : i32 to vector<1x256xi32>
    %454 = arith.addi %9, %453 : vector<1x256xi32>
    %c16_i32_105 = arith.constant 16 : i32
    %455 = vector.broadcast %c16_i32_105 : i32 to vector<1x256xi32>
    %456 = arith.cmpi slt, %454, %455 : vector<1x256xi32>
    %457 = arith.andi %452, %456 : vector<1x256xi1>
    %cst_106 = arith.constant 0.000000e+00 : f32
    %458 = vector.broadcast %cst_106 : f32 to vector<1x256xf32>
    %459 = arith.select %457, %448, %458 : vector<1x256xi1>, vector<1x256xf32>
    %c56 = arith.constant 56 : index
    %460 = memref.load %arg3[%c56] : memref<98xf32, #tpu.memory_space<smem>>
    %461 = vector.broadcast %460 : f32 to vector<1x256xf32>
    %462 = arith.mulf %360, %461 : vector<1x256xf32>
    %c57 = arith.constant 57 : index
    %463 = memref.load %arg3[%c57] : memref<98xf32, #tpu.memory_space<smem>>
    %464 = vector.broadcast %463 : f32 to vector<1x256xf32>
    %465 = arith.mulf %372, %464 : vector<1x256xf32>
    %466 = arith.addf %462, %465 : vector<1x256xf32>
    %c58 = arith.constant 58 : index
    %467 = memref.load %arg3[%c58] : memref<98xf32, #tpu.memory_space<smem>>
    %468 = vector.broadcast %467 : f32 to vector<1x256xf32>
    %469 = arith.mulf %384, %468 : vector<1x256xf32>
    %470 = arith.addf %466, %469 : vector<1x256xf32>
    %c59 = arith.constant 59 : index
    %471 = memref.load %arg3[%c59] : memref<98xf32, #tpu.memory_space<smem>>
    %472 = vector.broadcast %471 : f32 to vector<1x256xf32>
    %473 = arith.mulf %7, %472 : vector<1x256xf32>
    %474 = arith.addf %470, %473 : vector<1x256xf32>
    %c60 = arith.constant 60 : index
    %475 = memref.load %arg3[%c60] : memref<98xf32, #tpu.memory_space<smem>>
    %476 = vector.broadcast %475 : f32 to vector<1x256xf32>
    %477 = arith.mulf %396, %476 : vector<1x256xf32>
    %478 = arith.addf %474, %477 : vector<1x256xf32>
    %c61 = arith.constant 61 : index
    %479 = memref.load %arg3[%c61] : memref<98xf32, #tpu.memory_space<smem>>
    %480 = vector.broadcast %479 : f32 to vector<1x256xf32>
    %481 = arith.mulf %408, %480 : vector<1x256xf32>
    %482 = arith.addf %478, %481 : vector<1x256xf32>
    %c62 = arith.constant 62 : index
    %483 = memref.load %arg3[%c62] : memref<98xf32, #tpu.memory_space<smem>>
    %484 = vector.broadcast %483 : f32 to vector<1x256xf32>
    %485 = arith.mulf %420, %484 : vector<1x256xf32>
    %486 = arith.addf %482, %485 : vector<1x256xf32>
    %c32_i32_107 = arith.constant 32 : i32
    %487 = tpu.dynamic_rotate %486 by %c32_i32_107 dim 1 : vector<1x256xf32>, i32 -> vector<1x256xf32>
    %c-2_i32_108 = arith.constant -2 : i32
    %488 = vector.broadcast %c-2_i32_108 : i32 to vector<1x256xi32>
    %489 = arith.addi %9, %488 : vector<1x256xi32>
    %c0_i32_109 = arith.constant 0 : i32
    %490 = vector.broadcast %c0_i32_109 : i32 to vector<1x256xi32>
    %491 = arith.cmpi sge, %489, %490 : vector<1x256xi32>
    %c-2_i32_110 = arith.constant -2 : i32
    %492 = vector.broadcast %c-2_i32_110 : i32 to vector<1x256xi32>
    %493 = arith.addi %9, %492 : vector<1x256xi32>
    %c16_i32_111 = arith.constant 16 : i32
    %494 = vector.broadcast %c16_i32_111 : i32 to vector<1x256xi32>
    %495 = arith.cmpi slt, %493, %494 : vector<1x256xi32>
    %496 = arith.andi %491, %495 : vector<1x256xi1>
    %cst_112 = arith.constant 0.000000e+00 : f32
    %497 = vector.broadcast %cst_112 : f32 to vector<1x256xf32>
    %498 = arith.select %496, %487, %497 : vector<1x256xi1>, vector<1x256xf32>
    %499 = arith.addf %459, %498 : vector<1x256xf32>
    %c63 = arith.constant 63 : index
    %500 = memref.load %arg3[%c63] : memref<98xf32, #tpu.memory_space<smem>>
    %501 = vector.broadcast %500 : f32 to vector<1x256xf32>
    %502 = arith.mulf %360, %501 : vector<1x256xf32>
    %c64 = arith.constant 64 : index
    %503 = memref.load %arg3[%c64] : memref<98xf32, #tpu.memory_space<smem>>
    %504 = vector.broadcast %503 : f32 to vector<1x256xf32>
    %505 = arith.mulf %372, %504 : vector<1x256xf32>
    %506 = arith.addf %502, %505 : vector<1x256xf32>
    %c65 = arith.constant 65 : index
    %507 = memref.load %arg3[%c65] : memref<98xf32, #tpu.memory_space<smem>>
    %508 = vector.broadcast %507 : f32 to vector<1x256xf32>
    %509 = arith.mulf %384, %508 : vector<1x256xf32>
    %510 = arith.addf %506, %509 : vector<1x256xf32>
    %c66 = arith.constant 66 : index
    %511 = memref.load %arg3[%c66] : memref<98xf32, #tpu.memory_space<smem>>
    %512 = vector.broadcast %511 : f32 to vector<1x256xf32>
    %513 = arith.mulf %7, %512 : vector<1x256xf32>
    %514 = arith.addf %510, %513 : vector<1x256xf32>
    %c67 = arith.constant 67 : index
    %515 = memref.load %arg3[%c67] : memref<98xf32, #tpu.memory_space<smem>>
    %516 = vector.broadcast %515 : f32 to vector<1x256xf32>
    %517 = arith.mulf %396, %516 : vector<1x256xf32>
    %518 = arith.addf %514, %517 : vector<1x256xf32>
    %c68 = arith.constant 68 : index
    %519 = memref.load %arg3[%c68] : memref<98xf32, #tpu.memory_space<smem>>
    %520 = vector.broadcast %519 : f32 to vector<1x256xf32>
    %521 = arith.mulf %408, %520 : vector<1x256xf32>
    %522 = arith.addf %518, %521 : vector<1x256xf32>
    %c69 = arith.constant 69 : index
    %523 = memref.load %arg3[%c69] : memref<98xf32, #tpu.memory_space<smem>>
    %524 = vector.broadcast %523 : f32 to vector<1x256xf32>
    %525 = arith.mulf %420, %524 : vector<1x256xf32>
    %526 = arith.addf %522, %525 : vector<1x256xf32>
    %c16_i32_113 = arith.constant 16 : i32
    %527 = tpu.dynamic_rotate %526 by %c16_i32_113 dim 1 : vector<1x256xf32>, i32 -> vector<1x256xf32>
    %c-1_i32_114 = arith.constant -1 : i32
    %528 = vector.broadcast %c-1_i32_114 : i32 to vector<1x256xi32>
    %529 = arith.addi %9, %528 : vector<1x256xi32>
    %c0_i32_115 = arith.constant 0 : i32
    %530 = vector.broadcast %c0_i32_115 : i32 to vector<1x256xi32>
    %531 = arith.cmpi sge, %529, %530 : vector<1x256xi32>
    %c-1_i32_116 = arith.constant -1 : i32
    %532 = vector.broadcast %c-1_i32_116 : i32 to vector<1x256xi32>
    %533 = arith.addi %9, %532 : vector<1x256xi32>
    %c16_i32_117 = arith.constant 16 : i32
    %534 = vector.broadcast %c16_i32_117 : i32 to vector<1x256xi32>
    %535 = arith.cmpi slt, %533, %534 : vector<1x256xi32>
    %536 = arith.andi %531, %535 : vector<1x256xi1>
    %cst_118 = arith.constant 0.000000e+00 : f32
    %537 = vector.broadcast %cst_118 : f32 to vector<1x256xf32>
    %538 = arith.select %536, %527, %537 : vector<1x256xi1>, vector<1x256xf32>
    %539 = arith.addf %499, %538 : vector<1x256xf32>
    %c70 = arith.constant 70 : index
    %540 = memref.load %arg3[%c70] : memref<98xf32, #tpu.memory_space<smem>>
    %541 = vector.broadcast %540 : f32 to vector<1x256xf32>
    %542 = arith.mulf %360, %541 : vector<1x256xf32>
    %c71 = arith.constant 71 : index
    %543 = memref.load %arg3[%c71] : memref<98xf32, #tpu.memory_space<smem>>
    %544 = vector.broadcast %543 : f32 to vector<1x256xf32>
    %545 = arith.mulf %372, %544 : vector<1x256xf32>
    %546 = arith.addf %542, %545 : vector<1x256xf32>
    %c72 = arith.constant 72 : index
    %547 = memref.load %arg3[%c72] : memref<98xf32, #tpu.memory_space<smem>>
    %548 = vector.broadcast %547 : f32 to vector<1x256xf32>
    %549 = arith.mulf %384, %548 : vector<1x256xf32>
    %550 = arith.addf %546, %549 : vector<1x256xf32>
    %c73 = arith.constant 73 : index
    %551 = memref.load %arg3[%c73] : memref<98xf32, #tpu.memory_space<smem>>
    %552 = vector.broadcast %551 : f32 to vector<1x256xf32>
    %553 = arith.mulf %7, %552 : vector<1x256xf32>
    %554 = arith.addf %550, %553 : vector<1x256xf32>
    %c74 = arith.constant 74 : index
    %555 = memref.load %arg3[%c74] : memref<98xf32, #tpu.memory_space<smem>>
    %556 = vector.broadcast %555 : f32 to vector<1x256xf32>
    %557 = arith.mulf %396, %556 : vector<1x256xf32>
    %558 = arith.addf %554, %557 : vector<1x256xf32>
    %c75 = arith.constant 75 : index
    %559 = memref.load %arg3[%c75] : memref<98xf32, #tpu.memory_space<smem>>
    %560 = vector.broadcast %559 : f32 to vector<1x256xf32>
    %561 = arith.mulf %408, %560 : vector<1x256xf32>
    %562 = arith.addf %558, %561 : vector<1x256xf32>
    %c76 = arith.constant 76 : index
    %563 = memref.load %arg3[%c76] : memref<98xf32, #tpu.memory_space<smem>>
    %564 = vector.broadcast %563 : f32 to vector<1x256xf32>
    %565 = arith.mulf %420, %564 : vector<1x256xf32>
    %566 = arith.addf %562, %565 : vector<1x256xf32>
    %567 = arith.addf %539, %566 : vector<1x256xf32>
    %c77 = arith.constant 77 : index
    %568 = memref.load %arg3[%c77] : memref<98xf32, #tpu.memory_space<smem>>
    %569 = vector.broadcast %568 : f32 to vector<1x256xf32>
    %570 = arith.mulf %360, %569 : vector<1x256xf32>
    %c78 = arith.constant 78 : index
    %571 = memref.load %arg3[%c78] : memref<98xf32, #tpu.memory_space<smem>>
    %572 = vector.broadcast %571 : f32 to vector<1x256xf32>
    %573 = arith.mulf %372, %572 : vector<1x256xf32>
    %574 = arith.addf %570, %573 : vector<1x256xf32>
    %c79 = arith.constant 79 : index
    %575 = memref.load %arg3[%c79] : memref<98xf32, #tpu.memory_space<smem>>
    %576 = vector.broadcast %575 : f32 to vector<1x256xf32>
    %577 = arith.mulf %384, %576 : vector<1x256xf32>
    %578 = arith.addf %574, %577 : vector<1x256xf32>
    %c80 = arith.constant 80 : index
    %579 = memref.load %arg3[%c80] : memref<98xf32, #tpu.memory_space<smem>>
    %580 = vector.broadcast %579 : f32 to vector<1x256xf32>
    %581 = arith.mulf %7, %580 : vector<1x256xf32>
    %582 = arith.addf %578, %581 : vector<1x256xf32>
    %c81 = arith.constant 81 : index
    %583 = memref.load %arg3[%c81] : memref<98xf32, #tpu.memory_space<smem>>
    %584 = vector.broadcast %583 : f32 to vector<1x256xf32>
    %585 = arith.mulf %396, %584 : vector<1x256xf32>
    %586 = arith.addf %582, %585 : vector<1x256xf32>
    %c82 = arith.constant 82 : index
    %587 = memref.load %arg3[%c82] : memref<98xf32, #tpu.memory_space<smem>>
    %588 = vector.broadcast %587 : f32 to vector<1x256xf32>
    %589 = arith.mulf %408, %588 : vector<1x256xf32>
    %590 = arith.addf %586, %589 : vector<1x256xf32>
    %c83 = arith.constant 83 : index
    %591 = memref.load %arg3[%c83] : memref<98xf32, #tpu.memory_space<smem>>
    %592 = vector.broadcast %591 : f32 to vector<1x256xf32>
    %593 = arith.mulf %420, %592 : vector<1x256xf32>
    %594 = arith.addf %590, %593 : vector<1x256xf32>
    %c240_i32_119 = arith.constant 240 : i32
    %595 = tpu.dynamic_rotate %594 by %c240_i32_119 dim 1 : vector<1x256xf32>, i32 -> vector<1x256xf32>
    %c1_i32_120 = arith.constant 1 : i32
    %596 = vector.broadcast %c1_i32_120 : i32 to vector<1x256xi32>
    %597 = arith.addi %9, %596 : vector<1x256xi32>
    %c0_i32_121 = arith.constant 0 : i32
    %598 = vector.broadcast %c0_i32_121 : i32 to vector<1x256xi32>
    %599 = arith.cmpi sge, %597, %598 : vector<1x256xi32>
    %c1_i32_122 = arith.constant 1 : i32
    %600 = vector.broadcast %c1_i32_122 : i32 to vector<1x256xi32>
    %601 = arith.addi %9, %600 : vector<1x256xi32>
    %c16_i32_123 = arith.constant 16 : i32
    %602 = vector.broadcast %c16_i32_123 : i32 to vector<1x256xi32>
    %603 = arith.cmpi slt, %601, %602 : vector<1x256xi32>
    %604 = arith.andi %599, %603 : vector<1x256xi1>
    %cst_124 = arith.constant 0.000000e+00 : f32
    %605 = vector.broadcast %cst_124 : f32 to vector<1x256xf32>
    %606 = arith.select %604, %595, %605 : vector<1x256xi1>, vector<1x256xf32>
    %607 = arith.addf %567, %606 : vector<1x256xf32>
    %c84 = arith.constant 84 : index
    %608 = memref.load %arg3[%c84] : memref<98xf32, #tpu.memory_space<smem>>
    %609 = vector.broadcast %608 : f32 to vector<1x256xf32>
    %610 = arith.mulf %360, %609 : vector<1x256xf32>
    %c85 = arith.constant 85 : index
    %611 = memref.load %arg3[%c85] : memref<98xf32, #tpu.memory_space<smem>>
    %612 = vector.broadcast %611 : f32 to vector<1x256xf32>
    %613 = arith.mulf %372, %612 : vector<1x256xf32>
    %614 = arith.addf %610, %613 : vector<1x256xf32>
    %c86 = arith.constant 86 : index
    %615 = memref.load %arg3[%c86] : memref<98xf32, #tpu.memory_space<smem>>
    %616 = vector.broadcast %615 : f32 to vector<1x256xf32>
    %617 = arith.mulf %384, %616 : vector<1x256xf32>
    %618 = arith.addf %614, %617 : vector<1x256xf32>
    %c87 = arith.constant 87 : index
    %619 = memref.load %arg3[%c87] : memref<98xf32, #tpu.memory_space<smem>>
    %620 = vector.broadcast %619 : f32 to vector<1x256xf32>
    %621 = arith.mulf %7, %620 : vector<1x256xf32>
    %622 = arith.addf %618, %621 : vector<1x256xf32>
    %c88 = arith.constant 88 : index
    %623 = memref.load %arg3[%c88] : memref<98xf32, #tpu.memory_space<smem>>
    %624 = vector.broadcast %623 : f32 to vector<1x256xf32>
    %625 = arith.mulf %396, %624 : vector<1x256xf32>
    %626 = arith.addf %622, %625 : vector<1x256xf32>
    %c89 = arith.constant 89 : index
    %627 = memref.load %arg3[%c89] : memref<98xf32, #tpu.memory_space<smem>>
    %628 = vector.broadcast %627 : f32 to vector<1x256xf32>
    %629 = arith.mulf %408, %628 : vector<1x256xf32>
    %630 = arith.addf %626, %629 : vector<1x256xf32>
    %c90 = arith.constant 90 : index
    %631 = memref.load %arg3[%c90] : memref<98xf32, #tpu.memory_space<smem>>
    %632 = vector.broadcast %631 : f32 to vector<1x256xf32>
    %633 = arith.mulf %420, %632 : vector<1x256xf32>
    %634 = arith.addf %630, %633 : vector<1x256xf32>
    %c224_i32_125 = arith.constant 224 : i32
    %635 = tpu.dynamic_rotate %634 by %c224_i32_125 dim 1 : vector<1x256xf32>, i32 -> vector<1x256xf32>
    %c2_i32_126 = arith.constant 2 : i32
    %636 = vector.broadcast %c2_i32_126 : i32 to vector<1x256xi32>
    %637 = arith.addi %9, %636 : vector<1x256xi32>
    %c0_i32_127 = arith.constant 0 : i32
    %638 = vector.broadcast %c0_i32_127 : i32 to vector<1x256xi32>
    %639 = arith.cmpi sge, %637, %638 : vector<1x256xi32>
    %c2_i32_128 = arith.constant 2 : i32
    %640 = vector.broadcast %c2_i32_128 : i32 to vector<1x256xi32>
    %641 = arith.addi %9, %640 : vector<1x256xi32>
    %c16_i32_129 = arith.constant 16 : i32
    %642 = vector.broadcast %c16_i32_129 : i32 to vector<1x256xi32>
    %643 = arith.cmpi slt, %641, %642 : vector<1x256xi32>
    %644 = arith.andi %639, %643 : vector<1x256xi1>
    %cst_130 = arith.constant 0.000000e+00 : f32
    %645 = vector.broadcast %cst_130 : f32 to vector<1x256xf32>
    %646 = arith.select %644, %635, %645 : vector<1x256xi1>, vector<1x256xf32>
    %647 = arith.addf %607, %646 : vector<1x256xf32>
    %c91 = arith.constant 91 : index
    %648 = memref.load %arg3[%c91] : memref<98xf32, #tpu.memory_space<smem>>
    %649 = vector.broadcast %648 : f32 to vector<1x256xf32>
    %650 = arith.mulf %360, %649 : vector<1x256xf32>
    %c92 = arith.constant 92 : index
    %651 = memref.load %arg3[%c92] : memref<98xf32, #tpu.memory_space<smem>>
    %652 = vector.broadcast %651 : f32 to vector<1x256xf32>
    %653 = arith.mulf %372, %652 : vector<1x256xf32>
    %654 = arith.addf %650, %653 : vector<1x256xf32>
    %c93 = arith.constant 93 : index
    %655 = memref.load %arg3[%c93] : memref<98xf32, #tpu.memory_space<smem>>
    %656 = vector.broadcast %655 : f32 to vector<1x256xf32>
    %657 = arith.mulf %384, %656 : vector<1x256xf32>
    %658 = arith.addf %654, %657 : vector<1x256xf32>
    %c94 = arith.constant 94 : index
    %659 = memref.load %arg3[%c94] : memref<98xf32, #tpu.memory_space<smem>>
    %660 = vector.broadcast %659 : f32 to vector<1x256xf32>
    %661 = arith.mulf %7, %660 : vector<1x256xf32>
    %662 = arith.addf %658, %661 : vector<1x256xf32>
    %c95 = arith.constant 95 : index
    %663 = memref.load %arg3[%c95] : memref<98xf32, #tpu.memory_space<smem>>
    %664 = vector.broadcast %663 : f32 to vector<1x256xf32>
    %665 = arith.mulf %396, %664 : vector<1x256xf32>
    %666 = arith.addf %662, %665 : vector<1x256xf32>
    %c96 = arith.constant 96 : index
    %667 = memref.load %arg3[%c96] : memref<98xf32, #tpu.memory_space<smem>>
    %668 = vector.broadcast %667 : f32 to vector<1x256xf32>
    %669 = arith.mulf %408, %668 : vector<1x256xf32>
    %670 = arith.addf %666, %669 : vector<1x256xf32>
    %c97 = arith.constant 97 : index
    %671 = memref.load %arg3[%c97] : memref<98xf32, #tpu.memory_space<smem>>
    %672 = vector.broadcast %671 : f32 to vector<1x256xf32>
    %673 = arith.mulf %420, %672 : vector<1x256xf32>
    %674 = arith.addf %670, %673 : vector<1x256xf32>
    %c208_i32_131 = arith.constant 208 : i32
    %675 = tpu.dynamic_rotate %674 by %c208_i32_131 dim 1 : vector<1x256xf32>, i32 -> vector<1x256xf32>
    %c3_i32_132 = arith.constant 3 : i32
    %676 = vector.broadcast %c3_i32_132 : i32 to vector<1x256xi32>
    %677 = arith.addi %9, %676 : vector<1x256xi32>
    %c0_i32_133 = arith.constant 0 : i32
    %678 = vector.broadcast %c0_i32_133 : i32 to vector<1x256xi32>
    %679 = arith.cmpi sge, %677, %678 : vector<1x256xi32>
    %c3_i32_134 = arith.constant 3 : i32
    %680 = vector.broadcast %c3_i32_134 : i32 to vector<1x256xi32>
    %681 = arith.addi %9, %680 : vector<1x256xi32>
    %c16_i32_135 = arith.constant 16 : i32
    %682 = vector.broadcast %c16_i32_135 : i32 to vector<1x256xi32>
    %683 = arith.cmpi slt, %681, %682 : vector<1x256xi32>
    %684 = arith.andi %679, %683 : vector<1x256xi1>
    %cst_136 = arith.constant 0.000000e+00 : f32
    %685 = vector.broadcast %cst_136 : f32 to vector<1x256xf32>
    %686 = arith.select %684, %675, %685 : vector<1x256xi1>, vector<1x256xf32>
    %687 = arith.addf %647, %686 : vector<1x256xf32>
    %688 = arith.addf %348, %687 : vector<1x256xf32>
    %c0_137 = arith.constant 0 : index
    %689 = memref.load %arg4[%c0_137] : memref<1xf32, #tpu.memory_space<smem>>
    %690 = vector.broadcast %689 : f32 to vector<1x256xf32>
    %691 = arith.addf %688, %690 : vector<1x256xf32>
    %692 = arith.negf %691 : vector<1x256xf32>
    %693 = math.exp %692 : vector<1x256xf32>
    %cst_138 = arith.constant 1.000000e+00 : f32
    %694 = vector.broadcast %cst_138 : f32 to vector<1x256xf32>
    %695 = arith.addf %694, %693 : vector<1x256xf32>
    %696 = arith.divf %694, %695 : vector<1x256xf32>
    %c0_139 = arith.constant 0 : index
    %c0_140 = arith.constant 0 : index
    %c0_141 = arith.constant 0 : index
    %697 = vector.load %arg1[%c0_139, %c0_140, %c0_141] : memref<1x4x256xf32, #tpu.memory_space<vmem>>, vector<1x4x256xf32>
    %698 = vector.shape_cast %697 : vector<1x4x256xf32> to vector<4x256xf32>
    %699 = vector.broadcast %696 : vector<1x256xf32> to vector<4x256xf32>
    %700 = arith.mulf %698, %699 : vector<4x256xf32>
    %c0_142 = arith.constant 0 : index
    %c0_143 = arith.constant 0 : index
    %c0_144 = arith.constant 0 : index
    %701 = vector.load %arg5[%c0_142, %c0_143, %c0_144] : memref<1x4x256xf32, #tpu.memory_space<vmem>>, vector<1x4x256xf32>
    %702 = vector.shape_cast %701 : vector<1x4x256xf32> to vector<4x256xf32>
    %703 = vector.shape_cast %700 : vector<4x256xf32> to vector<1x4x256xf32>
    tpu.vector_store %arg5[%c0_142, %c0_143, %c0_144], %703 {strides = array<i32>} : memref<1x4x256xf32, #tpu.memory_space<vmem>>, vector<1x4x256xf32>,
    return
  }
  func.func @transform_0(%arg0: i32) -> (i32, i32, i32) {
    %c0_i32 = arith.constant 0 : i32
    %c0_i32_0 = arith.constant 0 : i32
    %c0_i32_1 = arith.constant 0 : i32
    return %arg0, %c0_i32, %c0_i32_0 : i32, i32, i32
  }
  func.func @transform_1(%arg0: i32) -> (i32, i32) {
    %c0_i32 = arith.constant 0 : i32
    %c0_i32_0 = arith.constant 0 : i32
    %c0_i32_1 = arith.constant 0 : i32
    return %c0_i32, %c0_i32_0 : i32, i32
  }
  func.func @transform_2(%arg0: i32) -> i32 {
    %c0_i32 = arith.constant 0 : i32
    %c0_i32_0 = arith.constant 0 : i32
    return %c0_i32 : i32
  }
  func.func @transform_3(%arg0: i32) -> i32 {
    %c0_i32 = arith.constant 0 : i32
    %c0_i32_0 = arith.constant 0 : i32
    return %c0_i32 : i32
  }
  func.func @transform_4(%arg0: i32) -> (i32, i32, i32) {
    %c0_i32 = arith.constant 0 : i32
    %c0_i32_0 = arith.constant 0 : i32
    %c0_i32_1 = arith.constant 0 : i32
    return %arg0, %c0_i32, %c0_i32_0 : i32, i32, i32
  }
}

</mosaic_0001>

<llo_original>
// kernel: tpu_custom_call.1
$region0: #{tpu_custom_call.1}
  #allocation0 [shape = 'u32[]', space=smem, size = 0x4, offset = 0x4, fixed_abs, tag = 'smem constant byte address 0x4 - core index']
  #allocation1 [shape = 'u32[72,128]{1,0:T(1,128)}', space=vmem, size = 0x9000, scoped, tag = 'internal scratch']
  #allocation2 [shape = 'f32[1]{0:T(128)S(6)}', space=smem, size = 0x200, scoped, tag = 'scoped memory for tpu_custom_call.1']
  %s0 = inlined_call_operand.hbm [shape: f32[2,4,256], index: 0, kind: input, shape index: {}]
  %s1 = inlined_call_operand.hbm [shape: s32[2,256], index: 1, kind: input, shape index: {}]
  %s2 = inlined_call_operand.vmem [shape: f32[98], index: 2, kind: input, shape index: {}]
  %s3 = inlined_call_operand.<no memory space> [shape: f32[1], index: 3, kind: input, shape index: {}]
  %s4 = inlined_call_operand.hbm [shape: f32[2,4,256], index: 4, kind: output, shape index: {}]
  %s5 = sld [smem:[#allocation0]]
  $region61: #{tpu_custom_call.1} parent=0
    _
  %s7 = ssub.s32 1, %s5
  %s8 = scalar_select 0, %s7, %s5
  %9 = sst [smem:[#allocation2]] %s3
  $region1: #{tpu_custom_call.1} parent=0
    #allocation3 [shape = 'u8[8192]{0}', space=vmem, size = 0x2000, scoped, tag = 'input window, operand 0']
    #allocation4 [shape = 's32[2]{0}', space=sflag, size = 0x8, scoped, tag = 'scoped memory for tpu_custom_call.1']
    #allocation5 [shape = 's32[2]{0}', space=sflag, size = 0x8, scoped, tag = 'scoped memory for tpu_custom_call.1']
    #allocation6 [shape = 's32[2]{0}', space=sflag, size = 0x8, scoped, tag = 'scoped memory for tpu_custom_call.1']
    #allocation7 [shape = 'u8[2048]{0}', space=vmem, size = 0x800, scoped, tag = 'input window, operand 1, single buffered']
    #allocation8 [shape = 's32[1]{0}', space=sflag, size = 0x4, scoped, tag = 'scoped memory for tpu_custom_call.1']
    #allocation9 [shape = 'u8[512]{0}', space=smem, size = 0x200, scoped, tag = 'input window, operand 2, single buffered']
    #allocation10 [shape = 'u8[8192]{0}', space=vmem, size = 0x2000, scoped, tag = 'output window, operand 0']
    %10 = vsyncpa [#allocation4], 0
    %s11 = scalar_lea.sflag [#allocation4], 1
    %12 = vsyncpa %s11, 0
    %13 = vsyncpa [#allocation8], 0
    %14 = vsyncpa [#allocation6], 0
    %15 = vsyncpa [#allocation5], 0
    %s16 = scalar_lea.sflag [#allocation5], 1
    %17 = vsyncpa %s16, 0
    loop: start=0, step=1, limit=4
    $region2: #{tpu_custom_call.1} parent=1 // loop_pre_header
      _
    $region3: #{tpu_custom_call.1} parent=1 // loop_header
      %s19 = sphi 0, %s23
      %p20 = scmp.ge.s32.totalorder %s19, 4
      %s29 = sphi 0, %s31
      %s32 = sphi 0, %s29
      %s33 = sphi 0, %s32
      %s49 = sphi 0, %s33
      %s53 = sphi 0, %s53
      %s55 = sphi 0, %s53
      %s56 = sphi 0, %s55
      %s70 = sphi 0, %s56
      %s74 = sphi 0, %s74
      %s76 = sphi 0, %s74
      %s77 = sphi 0, %s76
      %s91 = sphi 0, %s77
      %s95 = sphi 0, %s95
      %s97 = sphi 0, %s95
      %s98 = sphi 0, %s97
      %s112 = sphi 0, %s98
      %s118 = sphi 0, %s120
      %s121 = sphi 0, %s118
      %s122 = sphi 0, %s121
      %s138 = sphi 0, %s122
    $region4: #{tpu_custom_call.1} parent=1 // loop_header_branch
      %22 = sbr.rel (%p20) target = $region8
    $region5: #{tpu_custom_call.1} parent=1 // loop_body
      %s24 = ssub.s32 %s19, 1
      %s25 = ssub.s32 %s19, 2
      %s26 = sadd.s32 %s19, 1
      %s27 = ssub.s32 %s19, %s26
      %p28 = scmp.eq.s32.totalorder %s27, 0
      %s30 = sadd.s32 %s29, 1
      %s31 = scalar_select %p28, %s29, %s30
      %p34 = pneg %p28
      %p35 = scmp.eq.s32.totalorder %s19, 1
      %p36 = por %p34, %p35
      %p37 = scmp.ne.s32.totalorder %s29, %s32
      %p38 = scmp.eq.s32.totalorder %s19, 0
      %p39 = por %p37, %p38
      %p40 = scmp.ne.s32.totalorder %s29, %s32
      %p41 = scmp.eq.s32.totalorder %s24, 1
      %p42 = por %p40, %p41
      %p43 = scmp.ne.s32.totalorder %s32, %s33
      %p44 = scmp.eq.s32.totalorder %s24, 0
      %p45 = por %p43, %p44
      %p46 = scmp.ne.s32.totalorder %s32, %s33
      %p47 = scmp.eq.s32.totalorder %s25, 1
      %p48 = por %p46, %p47
      %p50 = scmp.ne.s32.totalorder %s33, %s49
      %p51 = scmp.eq.s32.totalorder %s25, 0
      %p52 = por %p50, %p51
      %s54 = sadd.s32 %s53, 1
      %p57 = scmp.eq.s32.totalorder %s19, 1
      %p58 = scmp.ne.s32.totalorder %s53, %s55
      %p59 = scmp.eq.s32.totalorder %s19, 0
      %p60 = por %p58, %p59
      %p61 = scmp.ne.s32.totalorder %s53, %s55
      %p62 = scmp.eq.s32.totalorder %s24, 1
      %p63 = por %p61, %p62
      %p64 = scmp.ne.s32.totalorder %s55, %s56
      %p65 = scmp.eq.s32.totalorder %s24, 0
      %p66 = por %p64, %p65
      %p67 = scmp.ne.s32.totalorder %s55, %s56
      %p68 = scmp.eq.s32.totalorder %s25, 1
      %p69 = por %p67, %p68
      %p71 = scmp.ne.s32.totalorder %s56, %s70
      %p72 = scmp.eq.s32.totalorder %s25, 0
      %p73 = por %p71, %p72
      %s75 = sadd.s32 %s74, 1
      %p78 = scmp.eq.s32.totalorder %s19, 1
      %p79 = scmp.ne.s32.totalorder %s74, %s76
      %p80 = scmp.eq.s32.totalorder %s19, 0
      %p81 = por %p79, %p80
      %p82 = scmp.ne.s32.totalorder %s74, %s76
      %p83 = scmp.eq.s32.totalorder %s24, 1
      %p84 = por %p82, %p83
      %p85 = scmp.ne.s32.totalorder %s76, %s77
      %p86 = scmp.eq.s32.totalorder %s24, 0
      %p87 = por %p85, %p86
      %p88 = scmp.ne.s32.totalorder %s76, %s77
      %p89 = scmp.eq.s32.totalorder %s25, 1
      %p90 = por %p88, %p89
      %p92 = scmp.ne.s32.totalorder %s77, %s91
      %p93 = scmp.eq.s32.totalorder %s25, 0
      %p94 = por %p92, %p93
      %s96 = sadd.s32 %s95, 1
      %p99 = scmp.eq.s32.totalorder %s19, 1
      %p100 = scmp.ne.s32.totalorder %s95, %s97
      %p101 = scmp.eq.s32.totalorder %s19, 0
      %p102 = por %p100, %p101
      %p103 = scmp.ne.s32.totalorder %s95, %s97
      %p104 = scmp.eq.s32.totalorder %s24, 1
      %p105 = por %p103, %p104
      %p106 = scmp.ne.s32.totalorder %s97, %s98
      %p107 = scmp.eq.s32.totalorder %s24, 0
      %p108 = por %p106, %p107
      %p109 = scmp.ne.s32.totalorder %s97, %s98
      %p110 = scmp.eq.s32.totalorder %s25, 1
      %p111 = por %p109, %p110
      %p113 = scmp.ne.s32.totalorder %s98, %s112
      %p114 = scmp.eq.s32.totalorder %s25, 0
      %p115 = por %p113, %p114
      %s116 = ssub.s32 %s19, %s26
      %p117 = scmp.eq.s32.totalorder %s116, 0
      %s119 = sadd.s32 %s118, 1
      %s120 = scalar_select %p117, %s118, %s119
      %p123 = pneg %p117
      %p124 = scmp.eq.s32.totalorder %s19, 1
      %p125 = por %p123, %p124
      %p126 = scmp.ne.s32.totalorder %s118, %s121
      %p127 = scmp.eq.s32.totalorder %s19, 0
      %p128 = por %p126, %p127
      %p129 = scmp.ne.s32.totalorder %s118, %s121
      %p130 = scmp.eq.s32.totalorder %s24, 1
      %p131 = por %p129, %p130
      %p132 = scmp.ne.s32.totalorder %s121, %s122
      %p133 = scmp.eq.s32.totalorder %s24, 0
      %p134 = por %p132, %p133
      %p135 = scmp.ne.s32.totalorder %s121, %s122
      %p136 = scmp.eq.s32.totalorder %s25, 1
      %p137 = por %p135, %p136
      %p139 = scmp.ne.s32.totalorder %s122, %s138
      %p140 = scmp.eq.s32.totalorder %s25, 0
      %p141 = por %p139, %p140
      %p142 = scmp.le.s32.totalorder 1, %s19
      %p143 = scmp.lt.s32.totalorder %s19, 3
      %p144 = pnand %p142, %p143
      %p145 = pneg %p144
      // Predicated region
      $region9: #{tpu_custom_call.1} parent=5 // pred_check
        _
      $region10: #{tpu_custom_call.1} parent=5 // pred_check_branch
        %147 = sbr.rel (%p144) target = $region12
      $region11: #{tpu_custom_call.1} parent=5 // pred_region
        %s148 = ssub.s32 %s19, 1
        // Predicated region
        $region13: #{tpu_custom_call.1} parent=11 // pred_check
          %p149 = pneg %p66
        $region14: #{tpu_custom_call.1} parent=11 // pred_check_branch
          %151 = sbr.rel (%p149) target = $region16
        $region15: #{tpu_custom_call.1} parent=11 // pred_region
          %153 = vsyncadd [#allocation8], 0
          %s155 = sshll.u32 %s1, 4
          %s156 = int_to_ptr.hbm [resolvable:$true] %s155
          %s157 = sshll.u32 [#allocation7], 4
          %s158 = int_to_ptr.vmem [resolvable:$true] %s157
          %160 = dma.hbm_to_vmem [thread:$0]  %s156, 64, %s158, [#allocation8]
        $region16: #{tpu_custom_call.1} parent=11 // pred_fallthru
          _
        // Predicated region
        $region17: #{tpu_custom_call.1} parent=11 // pred_check
          %p161 = pneg %p87
        $region18: #{tpu_custom_call.1} parent=11 // pred_check_branch
          %163 = sbr.rel (%p161) target = $region20
        $region19: #{tpu_custom_call.1} parent=11 // pred_region
          %165 = vsyncadd [#allocation6], 0
          %s167 = sshll.u32 %s2, 4
          %s168 = int_to_ptr.vmem [resolvable:$true] %s167
          %170 = dma.vmem_to_smem %s168, 16, [#allocation9], [#allocation6]
        $region20: #{tpu_custom_call.1} parent=11 // pred_fallthru
          _
        // Predicated region
        $region21: #{tpu_custom_call.1} parent=11 // pred_check
          %p171 = pneg %p108
        $region22: #{tpu_custom_call.1} parent=11 // pred_check_branch
          %173 = sbr.rel (%p171) target = $region24
        $region23: #{tpu_custom_call.1} parent=11 // pred_region
          _
        $region24: #{tpu_custom_call.1} parent=11 // pred_fallthru
          _
      $region12: #{tpu_custom_call.1} parent=5 // pred_fallthru
        _
      %p174 = scmp.lt.s32.totalorder %s19, 2
      // Predicated region
      $region25: #{tpu_custom_call.1} parent=5 // pred_check
        %p175 = pneg %p174
      $region26: #{tpu_custom_call.1} parent=5 // pred_check_branch
        %177 = sbr.rel (%p175) target = $region28
      $region27: #{tpu_custom_call.1} parent=5 // pred_region
        // Predicated region
        $region29: #{tpu_custom_call.1} parent=27 // pred_check
          %p178 = pneg %p39
        $region30: #{tpu_custom_call.1} parent=27 // pred_check_branch
          %180 = sbr.rel (%p178) target = $region32
        $region31: #{tpu_custom_call.1} parent=27 // pred_region
          %s181 = sand.u32 %s29, 1
          %s182 = scalar_lea.sflag [#allocation4], %s181
          %s183 = sand.u32 %s29, 1
          %s184 = smul.addr %s183, 8
          %s185 = scalar_lea.vmem [#allocation3], %s184
          %187 = vsyncadd %s182, 0
          %s188 = smul.addr %s19, 2
          %s189 = smul.addr %s188, 4
          %s190 = scalar_lea.hbm %s0, %s189
          %s192 = sshll.u32 %s190, 4
          %s193 = int_to_ptr.hbm [resolvable:$true] %s192
          %s194 = sshll.u32 %s185, 4
          %s195 = int_to_ptr.vmem [resolvable:$true] %s194
          %197 = dma.hbm_to_vmem [thread:$0]  %s193, 128, %s195, %s182
        $region32: #{tpu_custom_call.1} parent=27 // pred_fallthru
          _
      $region28: #{tpu_custom_call.1} parent=5 // pred_fallthru
        _
      %p198 = scmp.le.s32.totalorder 1, %s19
      %p199 = scmp.lt.s32.totalorder %s19, 3
      %p200 = pnand %p198, %p199
      %p201 = pneg %p200
      // Predicated region
      $region33: #{tpu_custom_call.1} parent=5 // pred_check
        _
      $region34: #{tpu_custom_call.1} parent=5 // pred_check_branch
        %203 = sbr.rel (%p200) target = $region36
      $region35: #{tpu_custom_call.1} parent=5 // pred_region
        %s204 = ssub.s32 %s19, 1
        %s205 = sand.u32 %s32, 1
        %s206 = scalar_lea.sflag [#allocation4], %s205
        %s207 = sand.u32 %s32, 1
        %s208 = smul.addr %s207, 8
        %s209 = scalar_lea.vmem [#allocation3], %s208
        // Predicated region
        $region37: #{tpu_custom_call.1} parent=35 // pred_check
          %p210 = pneg %p45
        $region38: #{tpu_custom_call.1} parent=35 // pred_check_branch
          %212 = sbr.rel (%p210) target = $region40
        $region39: #{tpu_custom_call.1} parent=35 // pred_region
          %214 = dma.done %s206, 128
        $region40: #{tpu_custom_call.1} parent=35 // pred_fallthru
          _
        // Predicated region
        $region41: #{tpu_custom_call.1} parent=35 // pred_check
          %p215 = pneg %p66
        $region42: #{tpu_custom_call.1} parent=35 // pred_check_branch
          %217 = sbr.rel (%p215) target = $region44
        $region43: #{tpu_custom_call.1} parent=35 // pred_region
          %219 = dma.done [#allocation8], 64
        $region44: #{tpu_custom_call.1} parent=35 // pred_fallthru
          _
        // Predicated region
        $region45: #{tpu_custom_call.1} parent=35 // pred_check
          %p220 = pneg %p87
        $region46: #{tpu_custom_call.1} parent=35 // pred_check_branch
          %222 = sbr.rel (%p220) target = $region48
        $region47: #{tpu_custom_call.1} parent=35 // pred_region
          %224 = dma.done [#allocation6], 16
        $region48: #{tpu_custom_call.1} parent=35 // pred_fallthru
          _
        %225 = sfence
        %s226 = sand.u32 %s32, 1
        %s227 = scalar_lea.sflag [#allocation4], %s226
        %s228 = sand.u32 %s32, 1
        %s229 = smul.addr %s228, 8
        %s230 = scalar_lea.vmem [#allocation3], %s229
        %p231 = pneg %p45
        %p232 = pneg %p42
        %p233 = pneg %p66
        %p234 = pneg %p63
        %p235 = pneg %p87
        %p236 = pneg %p84
        %p237 = pneg %p108
        %p238 = pneg %p105
        %p239 = pneg %p134
        %p240 = pneg %p131
        %s241 = sand.u32 %s121, 1
        %s242 = scalar_lea.sflag [#allocation5], %s241
        %s243 = sand.u32 %s121, 1
        %s244 = smul.addr %s243, 8
        %s245 = scalar_lea.vmem [#allocation10], %s244
        %v246 = vld [vmem:[%s209] sm:$0xff]
        %248 = vst [vmem:[#allocation1] ss:$2 sm:$0xff] %v246
        %v249 = vld.sshfl [vmem:[#allocation1] sm:$0xff pattern:$0x75316420]
        %v250 = vld.sshfl [vmem:[#allocation1 + $0x8] sm:$0xff pattern:$0x75316420]
        %vm253 = vcmask 1043456
        %v254 = vsel %vm253, %v249, -inf
        %v255 = vrot.slane %v254, 4
        %v256 = vmax.f32 %v254, %v255
        %v257 = vrot.slane %v256, 2
        %v258 = vmax.f32 %v256, %v257
        %v259 = vrot.slane %v258, 1
        %v260 = vmax.f32 %v258, %v259
        %v261 = vsel %vm253, %v250, -inf
        %v262 = vrot.slane %v261, 4
        %v263 = vmax.f32 %v261, %v262
        %v264 = vrot.slane %v263, 2
        %v265 = vmax.f32 %v263, %v264
        %v266 = vrot.slane %v265, 1
        %v267 = vmax.f32 %v265, %v266
        %268 = vst [vmem:[#allocation1] ss:$2 sm:$0xff] %v246
        %v269 = vld.sshfl [vmem:[#allocation1] sm:$0xff pattern:$0x75316420]
        %v270 = vld.sshfl [vmem:[#allocation1 + $0x8] sm:$0xff pattern:$0x75316420]
        %v273 = vsel %vm253, %v269, 0.0
        %v274 = vrot.slane %v273, 4
        %v275 = vadd.f32 %v273, %v274
        %v276 = vrot.slane %v275, 2
        %v277 = vadd.f32 %v275, %v276
        %v278 = vrot.slane %v277, 1
        %v279 = vadd.f32 %v277, %v278
        %v280 = vsel %vm253, %v270, 0.0
        %v281 = vrot.slane %v280, 4
        %v282 = vadd.f32 %v280, %v281
        %v283 = vrot.slane %v282, 2
        %v284 = vadd.f32 %v282, %v283
        %v285 = vrot.slane %v284, 1
        %v286 = vadd.f32 %v284, %v285
        %v287 = vmul.f32 %v279, 0.25
        %v288 = vmul.f32 %v286, 0.25
        %v289 = vld [vmem:[#allocation7] ss:$2 sm:$0x3]
        %s290 = scalar_lea.vmem [#allocation7], 1
        %v291 = vld [vmem:[%s290] ss:$2 sm:$0x3]
        %292 = vrot.lane.b32.xlu0 %v260, 3
        %v293 = vpop.permute.xlu0 %292
        %294 = vrot.lane.b32.xlu0 %v267, 3
        %v295 = vpop.permute.xlu0 %294
        %v296 = vlaneseq
        %v297 = vand.u32 %v296, 127
        %vm298 = vcmp.lt.s32.totalorder %v297, 3
        %v299 = vsel %vm298, %v293, %v295
        %v300 = vsel %vm298, %v295, %v293
        %v301 = vadd.s32 %v289, 4294967293
        %vm302 = vcmp.ge.s32.totalorder %v301, 0
        %vm303 = vcmp.lt.s32.totalorder %v301, 16
        %vm304 = vmand %vm302, %vm303
        %v307 = vrot.slane %v299, 7
        %vm308 = vcmask 1040384
        %v309 = vsel %vm308, %v300, %v307
        %v311 = vsel %vm304, %v309, 0.0
        %312 = vrot.lane.b32.xlu0 %v260, 2
        %v313 = vpop.permute.xlu0 %312
        %314 = vrot.lane.b32.xlu0 %v267, 2
        %v315 = vpop.permute.xlu0 %314
        %vm316 = vcmp.lt.s32.totalorder %v297, 2
        %v317 = vsel %vm316, %v313, %v315
        %v318 = vsel %vm316, %v315, %v313
        %v319 = vadd.s32 %v289, 4294967294
        %vm320 = vcmp.ge.s32.totalorder %v319, 0
        %vm321 = vcmp.lt.s32.totalorder %v319, 16
        %vm322 = vmand %vm320, %vm321
        %v325 = vrot.slane %v317, 7
        %v326 = vsel %vm308, %v318, %v325
        %v328 = vsel %vm322, %v326, 0.0
        %329 = vrot.lane.b32.xlu0 %v260, 1
        %v330 = vpop.permute.xlu0 %329
        %331 = vrot.lane.b32.xlu0 %v267, 1
        %v332 = vpop.permute.xlu0 %331
        %vm333 = vcmp.lt.s32.totalorder %v297, 1
        %v334 = vsel %vm333, %v330, %v332
        %v335 = vsel %vm333, %v332, %v330
        %v336 = vadd.s32 %v289, 4294967295
        %vm337 = vcmp.ge.s32.totalorder %v336, 0
        %vm338 = vcmp.lt.s32.totalorder %v336, 16
        %vm339 = vmand %vm337, %vm338
        %v342 = vrot.slane %v334, 7
        %v343 = vsel %vm308, %v335, %v342
        %v345 = vsel %vm339, %v343, 0.0
        %346 = vrot.lane.b32.xlu0 %v260, 127
        %v347 = vpop.permute.xlu0 %346
        %348 = vrot.lane.b32.xlu0 %v267, 127
        %v349 = vpop.permute.xlu0 %348
        %vm350 = vcmp.lt.s32.totalorder %v297, 127
        %v351 = vsel %vm350, %v347, %v349
        %v352 = vsel %vm350, %v349, %v347
        %v353 = vadd.s32 %v289, 1
        %vm354 = vcmp.ge.s32.totalorder %v353, 0
        %vm355 = vcmp.lt.s32.totalorder %v353, 16
        %vm356 = vmand %vm354, %vm355
        %v359 = vrot.slane %v352, 7
        %v360 = vsel %vm308, %v351, %v359
        %v362 = vsel %vm356, %v360, 0.0
        %363 = vrot.lane.b32.xlu0 %v260, 126
        %v364 = vpop.permute.xlu0 %363
        %365 = vrot.lane.b32.xlu0 %v267, 126
        %v366 = vpop.permute.xlu0 %365
        %vm367 = vcmp.lt.s32.totalorder %v297, 126
        %v368 = vsel %vm367, %v364, %v366
        %v369 = vsel %vm367, %v366, %v364
        %v370 = vadd.s32 %v289, 2
        %vm371 = vcmp.ge.s32.totalorder %v370, 0
        %vm372 = vcmp.lt.s32.totalorder %v370, 16
        %vm373 = vmand %vm371, %vm372
        %v376 = vrot.slane %v369, 7
        %v377 = vsel %vm308, %v368, %v376
        %v379 = vsel %vm373, %v377, 0.0
        %380 = vrot.lane.b32.xlu0 %v260, 125
        %v381 = vpop.permute.xlu0 %380
        %382 = vrot.lane.b32.xlu0 %v267, 125
        %v383 = vpop.permute.xlu0 %382
        %vm384 = vcmp.lt.s32.totalorder %v297, 125
        %v385 = vsel %vm384, %v381, %v383
        %v386 = vsel %vm384, %v383, %v381
        %v387 = vadd.s32 %v289, 3
        %vm388 = vcmp.ge.s32.totalorder %v387, 0
        %vm389 = vcmp.lt.s32.totalorder %v387, 16
        %vm390 = vmand %vm388, %vm389
        %v393 = vrot.slane %v386, 7
        %v394 = vsel %vm308, %v385, %v393
        %v396 = vsel %vm390, %v394, 0.0
        %s397 = sld [smem:[#allocation9]]
        %v398 = vstv %s397
        %v399 = vmul.f32 %v311, %v398
        %s400 = sld [smem:[#allocation9 + $0x1]]
        %v401 = vstv %s400
        %v402 = vmul.f32 %v328, %v401
        %v403 = vadd.f32 %v399, %v402
        %s404 = sld [smem:[#allocation9 + $0x2]]
        %v405 = vstv %s404
        %v406 = vmul.f32 %v345, %v405
        %v407 = vadd.f32 %v403, %v406
        %s408 = sld [smem:[#allocation9 + $0x3]]
        %v409 = vstv %s408
        %v410 = vmul.f32 %v260, %v409
        %v411 = vmul.f32 %v267, %v409
        %v414 = vrot.slane %v411, 7
        %v415 = vsel %vm308, %v410, %v414
        %v417 = vadd.f32 %v407, %v415
        %s418 = sld [smem:[#allocation9 + $0x4]]
        %v419 = vstv %s418
        %v420 = vmul.f32 %v362, %v419
        %v421 = vadd.f32 %v417, %v420
        %s422 = sld [smem:[#allocation9 + $0x5]]
        %v423 = vstv %s422
        %v424 = vmul.f32 %v379, %v423
        %v425 = vadd.f32 %v421, %v424
        %s426 = sld [smem:[#allocation9 + $0x6]]
        %v427 = vstv %s426
        %v428 = vmul.f32 %v396, %v427
        %v429 = vadd.f32 %v425, %v428
        %v431 = vperm.slane %v429, 0
        %v432 = vperm.slane %v429, 1
        %435 = vrot.lane.b32.xlu0 %v431, 48
        %v436 = vpop.permute.xlu0 %435
        %437 = vrot.lane.b32.xlu0 %v432, 48
        %v438 = vpop.permute.xlu0 %437
        %vm439 = vcmp.lt.s32.totalorder %v297, 48
        %v440 = vsel %vm439, %v436, %v438
        %v441 = vsel %vm439, %v438, %v436
        %v442 = vadd.s32 %v291, 4294967293
        %vm443 = vcmp.ge.s32.totalorder %v442, 0
        %vm444 = vcmp.lt.s32.totalorder %v442, 16
        %vm445 = vmand %vm443, %vm444
        %v448 = vrot.slane %v440, 7
        %v449 = vsel %vm308, %v441, %v448
        %v451 = vsel %vm445, %v449, 0.0
        %s452 = sld [smem:[#allocation9 + $0x7]]
        %v453 = vstv %s452
        %v454 = vmul.f32 %v311, %v453
        %s455 = sld [smem:[#allocation9 + $0x8]]
        %v456 = vstv %s455
        %v457 = vmul.f32 %v328, %v456
        %v458 = vadd.f32 %v454, %v457
        %s459 = sld [smem:[#allocation9 + $0x9]]
        %v460 = vstv %s459
        %v461 = vmul.f32 %v345, %v460
        %v462 = vadd.f32 %v458, %v461
        %s463 = sld [smem:[#allocation9 + $0xa]]
        %v464 = vstv %s463
        %v465 = vmul.f32 %v260, %v464
        %v466 = vmul.f32 %v267, %v464
        %v469 = vrot.slane %v466, 7
        %v470 = vsel %vm308, %v465, %v469
        %v472 = vadd.f32 %v462, %v470
        %s473 = sld [smem:[#allocation9 + $0xb]]
        %v474 = vstv %s473
        %v475 = vmul.f32 %v362, %v474
        %v476 = vadd.f32 %v472, %v475
        %s477 = sld [smem:[#allocation9 + $0xc]]
        %v478 = vstv %s477
        %v479 = vmul.f32 %v379, %v478
        %v480 = vadd.f32 %v476, %v479
        %s481 = sld [smem:[#allocation9 + $0xd]]
        %v482 = vstv %s481
        %v483 = vmul.f32 %v396, %v482
        %v484 = vadd.f32 %v480, %v483
        %v486 = vperm.slane %v484, 0
        %v487 = vperm.slane %v484, 1
        %490 = vrot.lane.b32.xlu0 %v486, 32
        %v491 = vpop.permute.xlu0 %490
        %492 = vrot.lane.b32.xlu0 %v487, 32
        %v493 = vpop.permute.xlu0 %492
        %vm494 = vcmp.lt.s32.totalorder %v297, 32
        %v495 = vsel %vm494, %v491, %v493
        %v496 = vsel %vm494, %v493, %v491
        %v497 = vadd.s32 %v291, 4294967294
        %vm498 = vcmp.ge.s32.totalorder %v497, 0
        %vm499 = vcmp.lt.s32.totalorder %v497, 16
        %vm500 = vmand %vm498, %vm499
        %v503 = vrot.slane %v495, 7
        %v504 = vsel %vm308, %v496, %v503
        %v506 = vsel %vm500, %v504, 0.0
        %v507 = vadd.f32 %v451, %v506
        %s508 = sld [smem:[#allocation9 + $0xe]]
        %v509 = vstv %s508
        %v510 = vmul.f32 %v311, %v509
        %s511 = sld [smem:[#allocation9 + $0xf]]
        %v512 = vstv %s511
        %v513 = vmul.f32 %v328, %v512
        %v514 = vadd.f32 %v510, %v513
        %s515 = sld [smem:[#allocation9 + $0x10]]
        %v516 = vstv %s515
        %v517 = vmul.f32 %v345, %v516
        %v518 = vadd.f32 %v514, %v517
        %s519 = sld [smem:[#allocation9 + $0x11]]
        %v520 = vstv %s519
        %v521 = vmul.f32 %v260, %v520
        %v522 = vmul.f32 %v267, %v520
        %v525 = vrot.slane %v522, 7
        %v526 = vsel %vm308, %v521, %v525
        %v528 = vadd.f32 %v518, %v526
        %s529 = sld [smem:[#allocation9 + $0x12]]
        %v530 = vstv %s529
        %v531 = vmul.f32 %v362, %v530
        %v532 = vadd.f32 %v528, %v531
        %s533 = sld [smem:[#allocation9 + $0x13]]
        %v534 = vstv %s533
        %v535 = vmul.f32 %v379, %v534
        %v536 = vadd.f32 %v532, %v535
        %s537 = sld [smem:[#allocation9 + $0x14]]
        %v538 = vstv %s537
        %v539 = vmul.f32 %v396, %v538
        %v540 = vadd.f32 %v536, %v539
        %v542 = vperm.slane %v540, 0
        %v543 = vperm.slane %v540, 1
        %546 = vrot.lane.b32.xlu0 %v542, 16
        %v547 = vpop.permute.xlu0 %546
        %548 = vrot.lane.b32.xlu0 %v543, 16
        %v549 = vpop.permute.xlu0 %548
        %vm550 = vcmp.lt.s32.totalorder %v297, 16
        %v551 = vsel %vm550, %v547, %v549
        %v552 = vsel %vm550, %v549, %v547
        %v553 = vadd.s32 %v291, 4294967295
        %vm554 = vcmp.ge.s32.totalorder %v553, 0
        %vm555 = vcmp.lt.s32.totalorder %v553, 16
        %vm556 = vmand %vm554, %vm555
        %v559 = vrot.slane %v551, 7
        %v560 = vsel %vm308, %v552, %v559
        %v562 = vsel %vm556, %v560, 0.0
        %v563 = vadd.f32 %v507, %v562
        %s564 = sld [smem:[#allocation9 + $0x15]]
        %v565 = vstv %s564
        %v566 = vmul.f32 %v311, %v565
        %s567 = sld [smem:[#allocation9 + $0x16]]
        %v568 = vstv %s567
        %v569 = vmul.f32 %v328, %v568
        %v570 = vadd.f32 %v566, %v569
        %s571 = sld [smem:[#allocation9 + $0x17]]
        %v572 = vstv %s571
        %v573 = vmul.f32 %v345, %v572
        %v574 = vadd.f32 %v570, %v573
        %s575 = sld [smem:[#allocation9 + $0x18]]
        %v576 = vstv %s575
        %v577 = vmul.f32 %v260, %v576
        %v578 = vmul.f32 %v267, %v576
        %v581 = vrot.slane %v578, 7
        %v582 = vsel %vm308, %v577, %v581
        %v584 = vadd.f32 %v574, %v582
        %s585 = sld [smem:[#allocation9 + $0x19]]
        %v586 = vstv %s585
        %v587 = vmul.f32 %v362, %v586
        %v588 = vadd.f32 %v584, %v587
        %s589 = sld [smem:[#allocation9 + $0x1a]]
        %v590 = vstv %s589
        %v591 = vmul.f32 %v379, %v590
        %v592 = vadd.f32 %v588, %v591
        %s593 = sld [smem:[#allocation9 + $0x1b]]
        %v594 = vstv %s593
        %v595 = vmul.f32 %v396, %v594
        %v596 = vadd.f32 %v592, %v595
        %v597 = vadd.f32 %v563, %v596
        %s598 = sld [smem:[#allocation9 + $0x1c]]
        %v599 = vstv %s598
        %v600 = vmul.f32 %v311, %v599
        %s601 = sld [smem:[#allocation9 + $0x1d]]
        %v602 = vstv %s601
        %v603 = vmul.f32 %v328, %v602
        %v604 = vadd.f32 %v600, %v603
        %s605 = sld [smem:[#allocation9 + $0x1e]]
        %v606 = vstv %s605
        %v607 = vmul.f32 %v345, %v606
        %v608 = vadd.f32 %v604, %v607
        %s609 = sld [smem:[#allocation9 + $0x1f]]
        %v610 = vstv %s609
        %v611 = vmul.f32 %v260, %v610
        %v612 = vmul.f32 %v267, %v610
        %v615 = vrot.slane %v612, 7
        %v616 = vsel %vm308, %v611, %v615
        %v618 = vadd.f32 %v608, %v616
        %s619 = sld [smem:[#allocation9 + $0x20]]
        %v620 = vstv %s619
        %v621 = vmul.f32 %v362, %v620
        %v622 = vadd.f32 %v618, %v621
        %s623 = sld [smem:[#allocation9 + $0x21]]
        %v624 = vstv %s623
        %v625 = vmul.f32 %v379, %v624
        %v626 = vadd.f32 %v622, %v625
        %s627 = sld [smem:[#allocation9 + $0x22]]
        %v628 = vstv %s627
        %v629 = vmul.f32 %v396, %v628
        %v630 = vadd.f32 %v626, %v629
        %v632 = vperm.slane %v630, 0
        %v633 = vperm.slane %v630, 1
        %636 = vrot.lane.b32.xlu0 %v632, 112
        %v637 = vpop.permute.xlu0 %636
        %638 = vrot.lane.b32.xlu0 %v633, 112
        %v639 = vpop.permute.xlu0 %638
        %vm640 = vcmp.lt.s32.totalorder %v297, 112
        %v641 = vsel %vm640, %v637, %v639
        %v642 = vsel %vm640, %v639, %v637
        %v643 = vadd.s32 %v291, 1
        %vm644 = vcmp.ge.s32.totalorder %v643, 0
        %vm645 = vcmp.lt.s32.totalorder %v643, 16
        %vm646 = vmand %vm644, %vm645
        %v649 = vrot.slane %v642, 7
        %v650 = vsel %vm308, %v641, %v649
        %v652 = vsel %vm646, %v650, 0.0
        %v653 = vadd.f32 %v597, %v652
        %s654 = sld [smem:[#allocation9 + $0x23]]
        %v655 = vstv %s654
        %v656 = vmul.f32 %v311, %v655
        %s657 = sld [smem:[#allocation9 + $0x24]]
        %v658 = vstv %s657
        %v659 = vmul.f32 %v328, %v658
        %v660 = vadd.f32 %v656, %v659
        %s661 = sld [smem:[#allocation9 + $0x25]]
        %v662 = vstv %s661
        %v663 = vmul.f32 %v345, %v662
        %v664 = vadd.f32 %v660, %v663
        %s665 = sld [smem:[#allocation9 + $0x26]]
        %v666 = vstv %s665
        %v667 = vmul.f32 %v260, %v666
        %v668 = vmul.f32 %v267, %v666
        %v671 = vrot.slane %v668, 7
        %v672 = vsel %vm308, %v667, %v671
        %v674 = vadd.f32 %v664, %v672
        %s675 = sld [smem:[#allocation9 + $0x27]]
        %v676 = vstv %s675
        %v677 = vmul.f32 %v362, %v676
        %v678 = vadd.f32 %v674, %v677
        %s679 = sld [smem:[#allocation9 + $0x28]]
        %v680 = vstv %s679
        %v681 = vmul.f32 %v379, %v680
        %v682 = vadd.f32 %v678, %v681
        %s683 = sld [smem:[#allocation9 + $0x29]]
        %v684 = vstv %s683
        %v685 = vmul.f32 %v396, %v684
        %v686 = vadd.f32 %v682, %v685
        %v688 = vperm.slane %v686, 0
        %v689 = vperm.slane %v686, 1
        %692 = vrot.lane.b32.xlu0 %v688, 96
        %v693 = vpop.permute.xlu0 %692
        %694 = vrot.lane.b32.xlu0 %v689, 96
        %v695 = vpop.permute.xlu0 %694
        %vm696 = vcmp.lt.s32.totalorder %v297, 96
        %v697 = vsel %vm696, %v693, %v695
        %v698 = vsel %vm696, %v695, %v693
        %v699 = vadd.s32 %v291, 2
        %vm700 = vcmp.ge.s32.totalorder %v699, 0
        %vm701 = vcmp.lt.s32.totalorder %v699, 16
        %vm702 = vmand %vm700, %vm701
        %v705 = vrot.slane %v698, 7
        %v706 = vsel %vm308, %v697, %v705
        %v708 = vsel %vm702, %v706, 0.0
        %v709 = vadd.f32 %v653, %v708
        %s710 = sld [smem:[#allocation9 + $0x2a]]
        %v711 = vstv %s710
        %v712 = vmul.f32 %v311, %v711
        %s713 = sld [smem:[#allocation9 + $0x2b]]
        %v714 = vstv %s713
        %v715 = vmul.f32 %v328, %v714
        %v716 = vadd.f32 %v712, %v715
        %s717 = sld [smem:[#allocation9 + $0x2c]]
        %v718 = vstv %s717
        %v719 = vmul.f32 %v345, %v718
        %v720 = vadd.f32 %v716, %v719
        %s721 = sld [smem:[#allocation9 + $0x2d]]
        %v722 = vstv %s721
        %v723 = vmul.f32 %v260, %v722
        %v724 = vmul.f32 %v267, %v722
        %v727 = vrot.slane %v724, 7
        %v728 = vsel %vm308, %v723, %v727
        %v730 = vadd.f32 %v720, %v728
        %s731 = sld [smem:[#allocation9 + $0x2e]]
        %v732 = vstv %s731
        %v733 = vmul.f32 %v362, %v732
        %v734 = vadd.f32 %v730, %v733
        %s735 = sld [smem:[#allocation9 + $0x2f]]
        %v736 = vstv %s735
        %v737 = vmul.f32 %v379, %v736
        %v738 = vadd.f32 %v734, %v737
        %s739 = sld [smem:[#allocation9 + $0x30]]
        %v740 = vstv %s739
        %v741 = vmul.f32 %v396, %v740
        %v742 = vadd.f32 %v738, %v741
        %v744 = vperm.slane %v742, 0
        %v745 = vperm.slane %v742, 1
        %748 = vrot.lane.b32.xlu0 %v744, 80
        %v749 = vpop.permute.xlu0 %748
        %750 = vrot.lane.b32.xlu0 %v745, 80
        %v751 = vpop.permute.xlu0 %750
        %vm752 = vcmp.lt.s32.totalorder %v297, 80
        %v753 = vsel %vm752, %v749, %v751
        %v754 = vsel %vm752, %v751, %v749
        %v755 = vadd.s32 %v291, 3
        %vm756 = vcmp.ge.s32.totalorder %v755, 0
        %vm757 = vcmp.lt.s32.totalorder %v755, 16
        %vm758 = vmand %vm756, %vm757
        %v761 = vrot.slane %v754, 7
        %v762 = vsel %vm308, %v753, %v761
        %v764 = vsel %vm758, %v762, 0.0
        %v765 = vadd.f32 %v709, %v764
        %766 = vrot.lane.b32.xlu0 %v287, 3
        %v767 = vpop.permute.xlu0 %766
        %768 = vrot.lane.b32.xlu0 %v288, 3
        %v769 = vpop.permute.xlu0 %768
        %v770 = vsel %vm298, %v767, %v769
        %v771 = vsel %vm298, %v769, %v767
        %v774 = vrot.slane %v770, 7
        %v775 = vsel %vm308, %v771, %v774
        %v777 = vsel %vm304, %v775, 0.0
        %778 = vrot.lane.b32.xlu0 %v287, 2
        %v779 = vpop.permute.xlu0 %778
        %780 = vrot.lane.b32.xlu0 %v288, 2
        %v781 = vpop.permute.xlu0 %780
        %v782 = vsel %vm316, %v779, %v781
        %v783 = vsel %vm316, %v781, %v779
        %v786 = vrot.slane %v782, 7
        %v787 = vsel %vm308, %v783, %v786
        %v789 = vsel %vm322, %v787, 0.0
        %790 = vrot.lane.b32.xlu0 %v287, 1
        %v791 = vpop.permute.xlu0 %790
        %792 = vrot.lane.b32.xlu0 %v288, 1
        %v793 = vpop.permute.xlu0 %792
        %v794 = vsel %vm333, %v791, %v793
        %v795 = vsel %vm333, %v793, %v791
        %v798 = vrot.slane %v794, 7
        %v799 = vsel %vm308, %v795, %v798
        %v801 = vsel %vm339, %v799, 0.0
        %802 = vrot.lane.b32.xlu0 %v287, 127
        %v803 = vpop.permute.xlu0 %802
        %804 = vrot.lane.b32.xlu0 %v288, 127
        %v805 = vpop.permute.xlu0 %804
        %v806 = vsel %vm350, %v803, %v805
        %v807 = vsel %vm350, %v805, %v803
        %v810 = vrot.slane %v807, 7
        %v811 = vsel %vm308, %v806, %v810
        %v813 = vsel %vm356, %v811, 0.0
        %814 = vrot.lane.b32.xlu0 %v287, 126
        %v815 = vpop.permute.xlu0 %814
        %816 = vrot.lane.b32.xlu0 %v288, 126
        %v817 = vpop.permute.xlu0 %816
        %v818 = vsel %vm367, %v815, %v817
        %v819 = vsel %vm367, %v817, %v815
        %v822 = vrot.slane %v819, 7
        %v823 = vsel %vm308, %v818, %v822
        %v825 = vsel %vm373, %v823, 0.0
        %826 = vrot.lane.b32.xlu0 %v287, 125
        %v827 = vpop.permute.xlu0 %826
        %828 = vrot.lane.b32.xlu0 %v288, 125
        %v829 = vpop.permute.xlu0 %828
        %v830 = vsel %vm384, %v827, %v829
        %v831 = vsel %vm384, %v829, %v827
        %v834 = vrot.slane %v831, 7
        %v835 = vsel %vm308, %v830, %v834
        %v837 = vsel %vm390, %v835, 0.0
        %s838 = sld [smem:[#allocation9 + $0x31]]
        %v839 = vstv %s838
        %v840 = vmul.f32 %v777, %v839
        %s841 = sld [smem:[#allocation9 + $0x32]]
        %v842 = vstv %s841
        %v843 = vmul.f32 %v789, %v842
        %v844 = vadd.f32 %v840, %v843
        %s845 = sld [smem:[#allocation9 + $0x33]]
        %v846 = vstv %s845
        %v847 = vmul.f32 %v801, %v846
        %v848 = vadd.f32 %v844, %v847
        %s849 = sld [smem:[#allocation9 + $0x34]]
        %v850 = vstv %s849
        %v851 = vmul.f32 %v287, %v850
        %v852 = vmul.f32 %v288, %v850
        %v855 = vrot.slane %v852, 7
        %v856 = vsel %vm308, %v851, %v855
        %v858 = vadd.f32 %v848, %v856
        %s859 = sld [smem:[#allocation9 + $0x35]]
        %v860 = vstv %s859
        %v861 = vmul.f32 %v813, %v860
        %v862 = vadd.f32 %v858, %v861
        %s863 = sld [smem:[#allocation9 + $0x36]]
        %v864 = vstv %s863
        %v865 = vmul.f32 %v825, %v864
        %v866 = vadd.f32 %v862, %v865
        %s867 = sld [smem:[#allocation9 + $0x37]]
        %v868 = vstv %s867
        %v869 = vmul.f32 %v837, %v868
        %v870 = vadd.f32 %v866, %v869
        %v872 = vperm.slane %v870, 0
        %v873 = vperm.slane %v870, 1
        %876 = vrot.lane.b32.xlu0 %v872, 48
        %v877 = vpop.permute.xlu0 %876
        %878 = vrot.lane.b32.xlu0 %v873, 48
        %v879 = vpop.permute.xlu0 %878
        %v880 = vsel %vm439, %v877, %v879
        %v881 = vsel %vm439, %v879, %v877
        %v884 = vrot.slane %v880, 7
        %v885 = vsel %vm308, %v881, %v884
        %v887 = vsel %vm445, %v885, 0.0
        %s888 = sld [smem:[#allocation9 + $0x38]]
        %v889 = vstv %s888
        %v890 = vmul.f32 %v777, %v889
        %s891 = sld [smem:[#allocation9 + $0x39]]
        %v892 = vstv %s891
        %v893 = vmul.f32 %v789, %v892
        %v894 = vadd.f32 %v890, %v893
        %s895 = sld [smem:[#allocation9 + $0x3a]]
        %v896 = vstv %s895
        %v897 = vmul.f32 %v801, %v896
        %v898 = vadd.f32 %v894, %v897
        %s899 = sld [smem:[#allocation9 + $0x3b]]
        %v900 = vstv %s899
        %v901 = vmul.f32 %v287, %v900
        %v902 = vmul.f32 %v288, %v900
        %v905 = vrot.slane %v902, 7
        %v906 = vsel %vm308, %v901, %v905
        %v908 = vadd.f32 %v898, %v906
        %s909 = sld [smem:[#allocation9 + $0x3c]]
        %v910 = vstv %s909
        %v911 = vmul.f32 %v813, %v910
        %v912 = vadd.f32 %v908, %v911
        %s913 = sld [smem:[#allocation9 + $0x3d]]
        %v914 = vstv %s913
        %v915 = vmul.f32 %v825, %v914
        %v916 = vadd.f32 %v912, %v915
        %s917 = sld [smem:[#allocation9 + $0x3e]]
        %v918 = vstv %s917
        %v919 = vmul.f32 %v837, %v918
        %v920 = vadd.f32 %v916, %v919
        %v922 = vperm.slane %v920, 0
        %v923 = vperm.slane %v920, 1
        %926 = vrot.lane.b32.xlu0 %v922, 32
        %v927 = vpop.permute.xlu0 %926
        %928 = vrot.lane.b32.xlu0 %v923, 32
        %v929 = vpop.permute.xlu0 %928
        %v930 = vsel %vm494, %v927, %v929
        %v931 = vsel %vm494, %v929, %v927
        %v934 = vrot.slane %v930, 7
        %v935 = vsel %vm308, %v931, %v934
        %v937 = vsel %vm500, %v935, 0.0
        %v938 = vadd.f32 %v887, %v937
        %s939 = sld [smem:[#allocation9 + $0x3f]]
        %v940 = vstv %s939
        %v941 = vmul.f32 %v777, %v940
        %s942 = sld [smem:[#allocation9 + $0x40]]
        %v943 = vstv %s942
        %v944 = vmul.f32 %v789, %v943
        %v945 = vadd.f32 %v941, %v944
        %s946 = sld [smem:[#allocation9 + $0x41]]
        %v947 = vstv %s946
        %v948 = vmul.f32 %v801, %v947
        %v949 = vadd.f32 %v945, %v948
        %s950 = sld [smem:[#allocation9 + $0x42]]
        %v951 = vstv %s950
        %v952 = vmul.f32 %v287, %v951
        %v953 = vmul.f32 %v288, %v951
        %v956 = vrot.slane %v953, 7
        %v957 = vsel %vm308, %v952, %v956
        %v959 = vadd.f32 %v949, %v957
        %s960 = sld [smem:[#allocation9 + $0x43]]
        %v961 = vstv %s960
        %v962 = vmul.f32 %v813, %v961
        %v963 = vadd.f32 %v959, %v962
        %s964 = sld [smem:[#allocation9 + $0x44]]
        %v965 = vstv %s964
        %v966 = vmul.f32 %v825, %v965
        %v967 = vadd.f32 %v963, %v966
        %s968 = sld [smem:[#allocation9 + $0x45]]
        %v969 = vstv %s968
        %v970 = vmul.f32 %v837, %v969
        %v971 = vadd.f32 %v967, %v970
        %v973 = vperm.slane %v971, 0
        %v974 = vperm.slane %v971, 1
        %977 = vrot.lane.b32.xlu0 %v973, 16
        %v978 = vpop.permute.xlu0 %977
        %979 = vrot.lane.b32.xlu0 %v974, 16
        %v980 = vpop.permute.xlu0 %979
        %v981 = vsel %vm550, %v978, %v980
        %v982 = vsel %vm550, %v980, %v978
        %v985 = vrot.slane %v981, 7
        %v986 = vsel %vm308, %v982, %v985
        %v988 = vsel %vm556, %v986, 0.0
        %v989 = vadd.f32 %v938, %v988
        %s990 = sld [smem:[#allocation9 + $0x46]]
        %v991 = vstv %s990
        %v992 = vmul.f32 %v777, %v991
        %s993 = sld [smem:[#allocation9 + $0x47]]
        %v994 = vstv %s993
        %v995 = vmul.f32 %v789, %v994
        %v996 = vadd.f32 %v992, %v995
        %s997 = sld [smem:[#allocation9 + $0x48]]
        %v998 = vstv %s997
        %v999 = vmul.f32 %v801, %v998
        %v1000 = vadd.f32 %v996, %v999
        %s1001 = sld [smem:[#allocation9 + $0x49]]
        %v1002 = vstv %s1001
        %v1003 = vmul.f32 %v287, %v1002
        %v1004 = vmul.f32 %v288, %v1002
        %v1007 = vrot.slane %v1004, 7
        %v1008 = vsel %vm308, %v1003, %v1007
        %v1010 = vadd.f32 %v1000, %v1008
        %s1011 = sld [smem:[#allocation9 + $0x4a]]
        %v1012 = vstv %s1011
        %v1013 = vmul.f32 %v813, %v1012
        %v1014 = vadd.f32 %v1010, %v1013
        %s1015 = sld [smem:[#allocation9 + $0x4b]]
        %v1016 = vstv %s1015
        %v1017 = vmul.f32 %v825, %v1016
        %v1018 = vadd.f32 %v1014, %v1017
        %s1019 = sld [smem:[#allocation9 + $0x4c]]
        %v1020 = vstv %s1019
        %v1021 = vmul.f32 %v837, %v1020
        %v1022 = vadd.f32 %v1018, %v1021
        %v1023 = vadd.f32 %v989, %v1022
        %s1024 = sld [smem:[#allocation9 + $0x4d]]
        %v1025 = vstv %s1024
        %v1026 = vmul.f32 %v777, %v1025
        %s1027 = sld [smem:[#allocation9 + $0x4e]]
        %v1028 = vstv %s1027
        %v1029 = vmul.f32 %v789, %v1028
        %v1030 = vadd.f32 %v1026, %v1029
        %s1031 = sld [smem:[#allocation9 + $0x4f]]
        %v1032 = vstv %s1031
        %v1033 = vmul.f32 %v801, %v1032
        %v1034 = vadd.f32 %v1030, %v1033
        %s1035 = sld [smem:[#allocation9 + $0x50]]
        %v1036 = vstv %s1035
        %v1037 = vmul.f32 %v287, %v1036
        %v1038 = vmul.f32 %v288, %v1036
        %v1041 = vrot.slane %v1038, 7
        %v1042 = vsel %vm308, %v1037, %v1041
        %v1044 = vadd.f32 %v1034, %v1042
        %s1045 = sld [smem:[#allocation9 + $0x51]]
        %v1046 = vstv %s1045
        %v1047 = vmul.f32 %v813, %v1046
        %v1048 = vadd.f32 %v1044, %v1047
        %s1049 = sld [smem:[#allocation9 + $0x52]]
        %v1050 = vstv %s1049
        %v1051 = vmul.f32 %v825, %v1050
        %v1052 = vadd.f32 %v1048, %v1051
        %s1053 = sld [smem:[#allocation9 + $0x53]]
        %v1054 = vstv %s1053
        %v1055 = vmul.f32 %v837, %v1054
        %v1056 = vadd.f32 %v1052, %v1055
        %v1058 = vperm.slane %v1056, 0
        %v1059 = vperm.slane %v1056, 1
        %1062 = vrot.lane.b32.xlu0 %v1058, 112
        %v1063 = vpop.permute.xlu0 %1062
        %1064 = vrot.lane.b32.xlu0 %v1059, 112
        %v1065 = vpop.permute.xlu0 %1064
        %v1066 = vsel %vm640, %v1063, %v1065
        %v1067 = vsel %vm640, %v1065, %v1063
        %v1070 = vrot.slane %v1067, 7
        %v1071 = vsel %vm308, %v1066, %v1070
        %v1073 = vsel %vm646, %v1071, 0.0
        %v1074 = vadd.f32 %v1023, %v1073
        %s1075 = sld [smem:[#allocation9 + $0x54]]
        %v1076 = vstv %s1075
        %v1077 = vmul.f32 %v777, %v1076
        %s1078 = sld [smem:[#allocation9 + $0x55]]
        %v1079 = vstv %s1078
        %v1080 = vmul.f32 %v789, %v1079
        %v1081 = vadd.f32 %v1077, %v1080
        %s1082 = sld [smem:[#allocation9 + $0x56]]
        %v1083 = vstv %s1082
        %v1084 = vmul.f32 %v801, %v1083
        %v1085 = vadd.f32 %v1081, %v1084
        %s1086 = sld [smem:[#allocation9 + $0x57]]
        %v1087 = vstv %s1086
        %v1088 = vmul.f32 %v287, %v1087
        %v1089 = vmul.f32 %v288, %v1087
        %v1092 = vrot.slane %v1089, 7
        %v1093 = vsel %vm308, %v1088, %v1092
        %v1095 = vadd.f32 %v1085, %v1093
        %s1096 = sld [smem:[#allocation9 + $0x58]]
        %v1097 = vstv %s1096
        %v1098 = vmul.f32 %v813, %v1097
        %v1099 = vadd.f32 %v1095, %v1098
        %s1100 = sld [smem:[#allocation9 + $0x59]]
        %v1101 = vstv %s1100
        %v1102 = vmul.f32 %v825, %v1101
        %v1103 = vadd.f32 %v1099, %v1102
        %s1104 = sld [smem:[#allocation9 + $0x5a]]
        %v1105 = vstv %s1104
        %v1106 = vmul.f32 %v837, %v1105
        %v1107 = vadd.f32 %v1103, %v1106
        %v1109 = vperm.slane %v1107, 0
        %v1110 = vperm.slane %v1107, 1
        %1113 = vrot.lane.b32.xlu0 %v1109, 96
        %v1114 = vpop.permute.xlu0 %1113
        %1115 = vrot.lane.b32.xlu0 %v1110, 96
        %v1116 = vpop.permute.xlu0 %1115
        %v1117 = vsel %vm696, %v1114, %v1116
        %v1118 = vsel %vm696, %v1116, %v1114
        %v1121 = vrot.slane %v1118, 7
        %v1122 = vsel %vm308, %v1117, %v1121
        %v1124 = vsel %vm702, %v1122, 0.0
        %v1125 = vadd.f32 %v1074, %v1124
        %s1126 = sld [smem:[#allocation9 + $0x5b]]
        %v1127 = vstv %s1126
        %v1128 = vmul.f32 %v777, %v1127
        %s1129 = sld [smem:[#allocation9 + $0x5c]]
        %v1130 = vstv %s1129
        %v1131 = vmul.f32 %v789, %v1130
        %v1132 = vadd.f32 %v1128, %v1131
        %s1133 = sld [smem:[#allocation9 + $0x5d]]
        %v1134 = vstv %s1133
        %v1135 = vmul.f32 %v801, %v1134
        %v1136 = vadd.f32 %v1132, %v1135
        %s1137 = sld [smem:[#allocation9 + $0x5e]]
        %v1138 = vstv %s1137
        %v1139 = vmul.f32 %v287, %v1138
        %v1140 = vmul.f32 %v288, %v1138
        %v1143 = vrot.slane %v1140, 7
        %v1144 = vsel %vm308, %v1139, %v1143
        %v1146 = vadd.f32 %v1136, %v1144
        %s1147 = sld [smem:[#allocation9 + $0x5f]]
        %v1148 = vstv %s1147
        %v1149 = vmul.f32 %v813, %v1148
        %v1150 = vadd.f32 %v1146, %v1149
        %s1151 = sld [smem:[#allocation9 + $0x60]]
        %v1152 = vstv %s1151
        %v1153 = vmul.f32 %v825, %v1152
        %v1154 = vadd.f32 %v1150, %v1153
        %s1155 = sld [smem:[#allocation9 + $0x61]]
        %v1156 = vstv %s1155
        %v1157 = vmul.f32 %v837, %v1156
        %v1158 = vadd.f32 %v1154, %v1157
        %v1160 = vperm.slane %v1158, 0
        %v1161 = vperm.slane %v1158, 1
        %1164 = vrot.lane.b32.xlu0 %v1160, 80
        %v1165 = vpop.permute.xlu0 %1164
        %1166 = vrot.lane.b32.xlu0 %v1161, 80
        %v1167 = vpop.permute.xlu0 %1166
        %v1168 = vsel %vm752, %v1165, %v1167
        %v1169 = vsel %vm752, %v1167, %v1165
        %v1172 = vrot.slane %v1169, 7
        %v1173 = vsel %vm308, %v1168, %v1172
        %v1175 = vsel %vm758, %v1173, 0.0
        %v1176 = vadd.f32 %v1125, %v1175
        %v1177 = vadd.f32 %v765, %v1176
        %s1178 = sld [smem:[#allocation2]]
        %v1179 = vstv %s1178
        %v1180 = vadd.f32 %v1177, %v1179
        %v1181 = vxor.u32 %v1180, 2147483648
        %v1182 = vmul.f32 %v1181, 1.442695
        %v1183 = vpow.pop %v1182
        %v1184 = vadd.f32 %v1183, 1.0
        %v1185 = vrcp.pop %v1184
        %v1186 = vmul.f32 %v1184, %v1185
        %v1187 = vsub.f32 1.0, %v1186
        %v1188 = vmul.f32 %v1185, %v1187
        %v1189 = vadd.f32 %v1185, %v1188
        %vm1190 = vweird.f32 %v1184
        %vm1191 = vweird.f32 %v1185
        %vm1192 = vmor %vm1190, %vm1191
        %v1193 = vsel %vm1192, %v1185, %v1189
        %v1194 = vand.u32 2147483647, %v1184
        %vm1195 = vcmp.eq.f32.partialorder %v1194, 8.507059e+37
        %v1196 = vand.u32 %v1184, 2147483648
        %v1197 = vor.u32 1.1754944e-38, %v1196
        %v1198 = vsel %vm1195, %v1197, %v1193
        %v1199 = vmul.f32 1.0, %v1198
        %v1201 = vperm.slane %v1199, 0
        %v1202 = vperm.slane %v1199, 1
        %v1203 = vrot.slane %v1202, 4
        %v1204 = vsel %vm253, %v1201, %v1203
        %v1206 = vmul.f32 %v246, %v1204
        %1207 = vst [vmem:[%s245] sm:$0xff] %v1206
        %s1208 = sand.u32 %s121, 1
        %s1209 = scalar_lea.sflag [#allocation5], %s1208
        %s1210 = sand.u32 %s121, 1
        %s1211 = smul.addr %s1210, 8
        %s1212 = scalar_lea.vmem [#allocation10], %s1211
        // Predicated region
        $region49: #{tpu_custom_call.1} parent=35 // pred_check
          %p1213 = pneg %p131
        $region50: #{tpu_custom_call.1} parent=35 // pred_check_branch
          %1215 = sbr.rel (%p1213) target = $region52
        $region51: #{tpu_custom_call.1} parent=35 // pred_region
          %1217 = vsyncadd %s1209, 0
          %s1218 = smul.addr %s24, 2
          %s1219 = smul.addr %s1218, 4
          %s1220 = scalar_lea.hbm %s4, %s1219
          %s1222 = sshll.u32 %s1212, 4
          %s1223 = int_to_ptr.vmem [resolvable:$true] %s1222
          %s1224 = sshll.u32 %s1220, 4
          %s1225 = int_to_ptr.hbm [resolvable:$true] %s1224
          %1227 = dma.vmem_to_hbm [thread:$0]  %s1223, 128, %s1225, %s1209
        $region52: #{tpu_custom_call.1} parent=35 // pred_fallthru
          _
      $region36: #{tpu_custom_call.1} parent=5 // pred_fallthru
        _
      %p1228 = scmp.le.s32.totalorder 2, %s19
      // Predicated region
      $region53: #{tpu_custom_call.1} parent=5 // pred_check
        %p1229 = pneg %p1228
      $region54: #{tpu_custom_call.1} parent=5 // pred_check_branch
        %1231 = sbr.rel (%p1229) target = $region56
      $region55: #{tpu_custom_call.1} parent=5 // pred_region
        %s1232 = ssub.s32 %s19, 2
        // Predicated region
        $region57: #{tpu_custom_call.1} parent=55 // pred_check
          %p1233 = pneg %p137
        $region58: #{tpu_custom_call.1} parent=55 // pred_check_branch
          %1235 = sbr.rel (%p1233) target = $region60
        $region59: #{tpu_custom_call.1} parent=55 // pred_region
          %s1236 = sand.u32 %s122, 1
          %s1237 = scalar_lea.sflag [#allocation5], %s1236
          %s1238 = sand.u32 %s122, 1
          %s1239 = smul.addr %s1238, 8
          %s1240 = scalar_lea.vmem [#allocation10], %s1239
          %1242 = dma.done %s1237, 128
        $region60: #{tpu_custom_call.1} parent=55 // pred_fallthru
          _
      $region56: #{tpu_custom_call.1} parent=5 // pred_fallthru
        _
    $region6: #{tpu_custom_call.1} parent=1 // loop_footer
      %s23 = sadd.s32 1, %s19
    $region7: #{tpu_custom_call.1} parent=1 // loop_footer_branch
      %18 = sbr.rel target = $region3
    $region8: #{tpu_custom_call.1} parent=1 // loop_exit
      _
    %1243 = vsyncpa [#allocation4], 1
    %s1244 = scalar_lea.sflag [#allocation4], 1
    %1245 = vsyncpa %s1244, 1
    %1246 = vsyncpa [#allocation8], 1
    %1247 = vsyncpa [#allocation5], 1
    %s1248 = scalar_lea.sflag [#allocation5], 1
    %1249 = vsyncpa %s1248, 1
    %1250 = vsyncpa [#allocation6], 1
    %s1251 = scalar_lea.sflag [#allocation6], 1
    %1252 = vsyncpa %s1251, 1

</llo_original>
